<compile_context>
chip_gen: v7x
topology: tpu7x:2x2x1
jax: 0.10.0
libtpu: 0.0.40
codegen_flags: <defaults>
</compile_context>

<pallas_src>
import jax
import jax.numpy as jnp
from jax.experimental import pallas as pl
from jax.experimental.pallas import tpu as pltpu


def utou_kernel(u_ref, side_ref, w_ref, b1_ref, out_ref):
    f32 = jnp.float32
    ncolF = out_ref.shape[1]
    F = (w_ref.shape[1] - ncolF) // 2
    ncol = ncolF // F

    u2d = u_ref[...]                                   # (tn, ncol*C) f32
    side = side_ref[...]                               # (tn, 2+ncol): [1/norm | color | mask]
    inv_norm = side[:, 0:1]                            # (tn, 1)  precomputed 1/normalizer
    col = side[:, 1:2]                                 # (tn, 1)  color id as f32

    # Single fused MXU matmul: [blockdiag(W1) | K-tiled 0.1*W2 | K-tiled 0.1*W3].
    big = jnp.dot(u2d, w_ref[...], preferred_element_type=jnp.float32)  # (tn, ncolF+2F)
    lin1 = big[:, :ncolF] + b1_ref[...]                # per-color Conv1d(k=1) + bias
    z2 = big[:, ncolF:ncolF + F] * inv_norm            # 0.1 * lin2(mean2)   (tn, F)
    z3 = big[:, ncolF + F:] * inv_norm                 # 0.1 * lin3(mean2)   (tn, F)

    # scatter_add of z2 into color block `col` + masked z3 on every block,
    # built with VPU compares/selects (no extra MXU output passes).
    blocks = []
    for c in range(ncol):
        s_c = (col == f32(c)).astype(f32)              # one_hot(coloring)[:, c]  (tn, 1)
        m_c = side[:, 2 + c:3 + c]                     # mask[:, c]               (tn, 1)
        blocks.append(s_c * z2 + m_c * z3)             # (tn, F)
    extra = jnp.concatenate(blocks, axis=1)            # (tn, ncol*F)

    # residual + lin1 + scatter_add(z2) + mask*z3*0.1   (0.1s folded into weights)
    out_ref[...] = u2d + lin1 + extra


def _round_up(x, m):
    return ((x + m - 1) // m) * m


def _pick_tile(n, tn_req, min_steps=8):
    """Row tile: as large as tn_req, but aim for >= min_steps grid steps on big
    problems (v7x megacore pipelining) while never dropping below 256 rows
    (per-grid-step overhead amortization). The wrapper pads N up to a multiple
    of the returned tile, so any N takes this path."""
    tn_req = max(8, (int(tn_req) // 8) * 8)
    per_step = _round_up(pl.cdiv(n, min_steps), 8)
    tn = min(tn_req, max(256, per_step))
    tn = min(tn, _round_up(n, 8))
    return max(8, tn)


def utou_forward(u, normalizer, mask, coloring, w1, b1, w2, w3, *, tn=2048):
    """u: (N, n_colors, C) f32; w*: torch Conv1d weights (F, C, 1); b1: (F,);
    normalizer: (N,1,1) or (N,1); mask: (N, n_colors); coloring: (N, 1) int."""
    N, ncol, C = u.shape
    F = w1.shape[0]
    assert C == F, "residual=True requires in_features == out_features"
    ncolC, ncolF = ncol * C, ncol * F
    f32 = jnp.float32

    # ---- lane-dense streamed tensors ----
    u2d = u.astype(f32).reshape(N, ncolC)                               # (N, ncol*C)
    inv_norm = (1.0 / jnp.reshape(normalizer, (N, 1))).astype(f32)      # precompute 1/norm
    col2d = coloring.reshape(N, 1).astype(f32)                          # (N, 1)
    mask2d = mask.astype(f32).reshape(N, ncol)                          # (N, ncol)
    side = jnp.concatenate([inv_norm, col2d, mask2d], axis=1)           # (N, 2+ncol)

    # ---- fused weight prep (once, outside the kernel) ----
    w1t = jnp.transpose(w1[:, :, 0]).astype(f32)                        # (C, F)
    w2t = jnp.transpose(w2[:, :, 0]).astype(f32) * 0.1                  # fold *0.1 (z2 path)
    w3t = jnp.transpose(w3[:, :, 0]).astype(f32) * 0.1                  # fold *0.1 (mask*z3*0.1)
    w1_bd = jnp.kron(jnp.eye(ncol, dtype=f32), w1t)                     # (ncol*C, ncol*F)
    w2_k = jnp.tile(w2t, (ncol, 1))                                     # (ncol*C, F) K-fold = mean2
    w3_k = jnp.tile(w3t, (ncol, 1))                                     # (ncol*C, F)
    w_big = jnp.concatenate([w1_bd, w2_k, w3_k], axis=1)                # (ncol*C, ncol*F + 2F)
    b1_t = jnp.tile(b1.astype(f32), ncol).reshape(1, ncolF)             # (1, ncol*F)

    # ---- tiling: fixed big tile + wrapper-side padding (no divisor hunting) ----
    tn = _pick_tile(N, tn)
    n_pad = _round_up(N, tn)
    if n_pad != N:
        pad = n_pad - N
        u2d = jnp.pad(u2d, ((0, pad), (0, 0)))
        side = jnp.pad(side, ((0, pad), (0, 0)))       # pad rows: inv_norm=0 -> finite, sliced off
    grid = (n_pad // tn,)

    # ---- explicit VMEM budget (double-buffered tiles + resident constants) ----
    tile_bytes = 4 * (tn * ncolC + tn * ncolF + tn * (2 + ncol))
    const_bytes = 4 * (ncolC * (ncolF + 2 * F) + ncolF)
    vmem_bytes = 2 * tile_bytes + 2 * const_bytes + (4 << 20)
    vmem_bytes = int(min(max(vmem_bytes, 32 << 20), 64 << 20))          # safe on v5e/v6e/v7x

    out2d = pl.pallas_call(
        utou_kernel,
        out_shape=jax.ShapeDtypeStruct((n_pad, ncolF), f32),
        grid_spec=pltpu.PrefetchScalarGridSpec(
            num_scalar_prefetch=0,
            grid=grid,
            in_specs=[
                pl.BlockSpec((tn, ncolC), lambda i: (i, 0)),            # u (lane-dense)
                pl.BlockSpec((tn, 2 + ncol), lambda i: (i, 0)),         # [1/norm | color | mask]
                pl.BlockSpec((ncolC, ncolF + 2 * F), lambda i: (0, 0)), # fused W (resident)
                pl.BlockSpec((1, ncolF), lambda i: (0, 0)),             # tiled bias (resident)
            ],
            out_specs=pl.BlockSpec((tn, ncolF), lambda i: (i, 0)),
        ),
        compiler_params=pltpu.CompilerParams(
            dimension_semantics=("parallel",),
            vmem_limit_bytes=vmem_bytes),
    )(u2d, side, w_big, b1_t)

    return out2d[:N].reshape(N, ncol, F)


def utou_ref(u, normalizer, mask, coloring, w1, b1, w2, w3):
    """Pure-JAX reference mirroring the PyTorch forward (residual=True)."""
    ncol = u.shape[1]
    mean2 = jnp.sum(u / normalizer, axis=1)                     # (N, C)
    out = jnp.einsum('ncd,fd->ncf', u, w1[:, :, 0]) + b1        # (N, ncol, F)
    z2 = (mean2 @ w2[:, :, 0].T) * 0.1                          # (N, F)
    z3 = mean2 @ w3[:, :, 0].T                                  # (N, F)
    onehot = jax.nn.one_hot(coloring[:, 0], ncol, dtype=u.dtype)
    out = out + onehot[..., None] * z2[:, None, :]
    out = out + mask[..., None] * z3[:, None, :] * 0.1
    return u + out


if __name__ == "__main__":
    key = jax.random.PRNGKey(0)
    # N deliberately not a multiple of 8/256 to exercise the pad + cdiv path.
    N, ncol, C, F = 250, 4, 32, 32       # residual requires C == F; ncol*C = 128 lanes
    ks = jax.random.split(key, 8)

    u = jax.random.normal(ks[0], (N, ncol, C), jnp.float32)
    normalizer = jax.random.uniform(ks[1], (N, 1, 1), jnp.float32, 1.0, 3.0)
    mask = (jax.random.uniform(ks[2], (N, ncol)) > 0.3).astype(jnp.float32)
    coloring = jax.random.randint(ks[3], (N, 1), 0, ncol, dtype=jnp.int32)

    # torch Conv1d(k=1) params: weight (F, C, 1), bias (F,)
    w1 = jax.random.normal(ks[4], (F, C, 1), jnp.float32) * 0.1
    b1 = jax.random.normal(ks[5], (F,), jnp.float32) * 0.1
    w2 = jax.random.normal(ks[6], (F, C, 1), jnp.float32) * 0.1
    w3 = jax.random.normal(ks[7], (F, C, 1), jnp.float32) * 0.1

    out = utou_forward(u, normalizer, mask, coloring, w1, b1, w2, w3)
    out = jax.block_until_ready(out)

    ref = utou_ref(u, normalizer, mask, coloring, w1, b1, w2, w3)
    assert out.shape == ref.shape
    assert jnp.allclose(out, ref, rtol=1e-4, atol=1e-4), "kernel mismatch vs reference"
    print("KERNEL_OK")
</pallas_src>

<mosaic_0001>
module attributes {stable_mosaic.version = 11 : i64} {
  func.func @utou_kernel(%arg0: i32, %arg1: memref<256x128xf32, #tpu.memory_space<vmem>>, %arg2: memref<256x6xf32, #tpu.memory_space<vmem>>, %arg3: memref<128x192xf32, #tpu.memory_space<vmem>>, %arg4: memref<1x128xf32, #tpu.memory_space<vmem>>, %arg5: memref<256x128xf32, #tpu.memory_space<vmem>>) attributes {dimension_semantics = [#tpu.dimension_semantics<parallel>], iteration_bounds = array<i64: 1>, scalar_prefetch = 0 : i64, scratch_operands = 0 : i64, tpu.core_type = #tpu.core_type<tc>, window_params = [{transform_indices = @transform_0, window_bounds = array<i64: 256, 128>}, {transform_indices = @transform_1, window_bounds = array<i64: 256, 6>}, {pipeline_mode = #tpu.pipeline_mode<synchronous>, transform_indices = @transform_2, window_bounds = array<i64: 128, 192>}, {pipeline_mode = #tpu.pipeline_mode<synchronous>, transform_indices = @transform_3, window_bounds = array<i64: 1, 128>}, {transform_indices = @transform_4, window_bounds = array<i64: 256, 128>}]} {
    %c0 = arith.constant 0 : index
    %c0_0 = arith.constant 0 : index
    %0 = vector.load %arg1[%c0, %c0_0] : memref<256x128xf32, #tpu.memory_space<vmem>>, vector<256x128xf32>
    %c0_1 = arith.constant 0 : index
    %c0_2 = arith.constant 0 : index
    %1 = vector.load %arg2[%c0_1, %c0_2] : memref<256x6xf32, #tpu.memory_space<vmem>>, vector<256x6xf32>
    %2 = vector.extract_strided_slice %1 {offsets = [0, 0], sizes = [256, 1], strides = [1, 1]} : vector<256x6xf32> to vector<256x1xf32>
    %3 = vector.extract_strided_slice %1 {offsets = [0, 1], sizes = [256, 1], strides = [1, 1]} : vector<256x6xf32> to vector<256x1xf32>
    %c0_3 = arith.constant 0 : index
    %c0_4 = arith.constant 0 : index
    %4 = vector.load %arg3[%c0_3, %c0_4] : memref<128x192xf32, #tpu.memory_space<vmem>>, vector<128x192xf32>
    %cst = arith.constant dense<0.000000e+00> : vector<256x192xf32>
    %5 = tpu.matmul %0, %4, %cst {dimension_numbers = #tpu.dot_dimension_numbers<[1], [0], [0], [1], [0, 0, 1, 1], [], []>} : vector<256x128xf32>, vector<128x192xf32>, vector<256x192xf32> -> vector<256x192xf32>
    %6 = vector.extract_strided_slice %5 {offsets = [0, 0], sizes = [256, 128], strides = [1, 1]} : vector<256x192xf32> to vector<256x128xf32>
    %c0_5 = arith.constant 0 : index
    %c0_6 = arith.constant 0 : index
    %7 = vector.load %arg4[%c0_5, %c0_6] : memref<1x128xf32, #tpu.memory_space<vmem>>, vector<1x128xf32>
    %8 = vector.broadcast %7 : vector<1x128xf32> to vector<256x128xf32>
    %9 = arith.addf %6, %8 : vector<256x128xf32>
    %10 = vector.extract_strided_slice %5 {offsets = [0, 128], sizes = [256, 32], strides = [1, 1]} : vector<256x192xf32> to vector<256x32xf32>
    %11 = vector.broadcast %2 : vector<256x1xf32> to vector<256x32xf32>
    %12 = arith.mulf %10, %11 : vector<256x32xf32>
    %13 = vector.extract_strided_slice %5 {offsets = [0, 160], sizes = [256, 32], strides = [1, 1]} : vector<256x192xf32> to vector<256x32xf32>
    %14 = vector.broadcast %2 : vector<256x1xf32> to vector<256x32xf32>
    %15 = arith.mulf %13, %14 : vector<256x32xf32>
    %cst_7 = arith.constant 0.000000e+00 : f32
    %16 = vector.broadcast %cst_7 : f32 to vector<256x1xf32>
    %17 = arith.cmpf oeq, %3, %16 : vector<256x1xf32>
    %18 = arith.extui %17 : vector<256x1xi1> to vector<256x1xi32>
    %19 = arith.sitofp %18 : vector<256x1xi32> to vector<256x1xf32>
    %20 = vector.extract_strided_slice %1 {offsets = [0, 2], sizes = [256, 1], strides = [1, 1]} : vector<256x6xf32> to vector<256x1xf32>
    %21 = vector.broadcast %19 : vector<256x1xf32> to vector<256x32xf32>
    %22 = arith.mulf %21, %12 : vector<256x32xf32>
    %23 = vector.broadcast %20 : vector<256x1xf32> to vector<256x32xf32>
    %24 = arith.mulf %23, %15 : vector<256x32xf32>
    %25 = arith.addf %22, %24 : vector<256x32xf32>
    %cst_8 = arith.constant 1.000000e+00 : f32
    %26 = vector.broadcast %cst_8 : f32 to vector<256x1xf32>
    %27 = arith.cmpf oeq, %3, %26 : vector<256x1xf32>
    %28 = arith.extui %27 : vector<256x1xi1> to vector<256x1xi32>
    %29 = arith.sitofp %28 : vector<256x1xi32> to vector<256x1xf32>
    %30 = vector.extract_strided_slice %1 {offsets = [0, 3], sizes = [256, 1], strides = [1, 1]} : vector<256x6xf32> to vector<256x1xf32>
    %31 = vector.broadcast %29 : vector<256x1xf32> to vector<256x32xf32>
    %32 = arith.mulf %31, %12 : vector<256x32xf32>
    %33 = vector.broadcast %30 : vector<256x1xf32> to vector<256x32xf32>
    %34 = arith.mulf %33, %15 : vector<256x32xf32>
    %35 = arith.addf %32, %34 : vector<256x32xf32>
    %cst_9 = arith.constant 2.000000e+00 : f32
    %36 = vector.broadcast %cst_9 : f32 to vector<256x1xf32>
    %37 = arith.cmpf oeq, %3, %36 : vector<256x1xf32>
    %38 = arith.extui %37 : vector<256x1xi1> to vector<256x1xi32>
    %39 = arith.sitofp %38 : vector<256x1xi32> to vector<256x1xf32>
    %40 = vector.extract_strided_slice %1 {offsets = [0, 4], sizes = [256, 1], strides = [1, 1]} : vector<256x6xf32> to vector<256x1xf32>
    %41 = vector.broadcast %39 : vector<256x1xf32> to vector<256x32xf32>
    %42 = arith.mulf %41, %12 : vector<256x32xf32>
    %43 = vector.broadcast %40 : vector<256x1xf32> to vector<256x32xf32>
    %44 = arith.mulf %43, %15 : vector<256x32xf32>
    %45 = arith.addf %42, %44 : vector<256x32xf32>
    %cst_10 = arith.constant 3.000000e+00 : f32
    %46 = vector.broadcast %cst_10 : f32 to vector<256x1xf32>
    %47 = arith.cmpf oeq, %3, %46 : vector<256x1xf32>
    %48 = arith.extui %47 : vector<256x1xi1> to vector<256x1xi32>
    %49 = arith.sitofp %48 : vector<256x1xi32> to vector<256x1xf32>
    %50 = vector.extract_strided_slice %1 {offsets = [0, 5], sizes = [256, 1], strides = [1, 1]} : vector<256x6xf32> to vector<256x1xf32>
    %51 = vector.broadcast %49 : vector<256x1xf32> to vector<256x32xf32>
    %52 = arith.mulf %51, %12 : vector<256x32xf32>
    %53 = vector.broadcast %50 : vector<256x1xf32> to vector<256x32xf32>
    %54 = arith.mulf %53, %15 : vector<256x32xf32>
    %55 = arith.addf %52, %54 : vector<256x32xf32>
    %56 = tpu.concatenate %25, %35, %45, %55 in 1 : vector<256x32xf32>, vector<256x32xf32>, vector<256x32xf32>, vector<256x32xf32> -> vector<256x128xf32>
    %57 = arith.addf %0, %9 : vector<256x128xf32>
    %58 = arith.addf %57, %56 : vector<256x128xf32>
    %c0_11 = arith.constant 0 : index
    %c0_12 = arith.constant 0 : index
    %59 = vector.load %arg5[%c0_11, %c0_12] : memref<256x128xf32, #tpu.memory_space<vmem>>, vector<256x128xf32>
    tpu.vector_store %arg5[%c0_11, %c0_12], %58 {strides = array<i32>} : memref<256x128xf32, #tpu.memory_space<vmem>>, vector<256x128xf32>,
    return
  }
  func.func @transform_0(%arg0: i32) -> (i32, i32) {
    %c0_i32 = arith.constant 0 : i32
    %c0_i32_0 = arith.constant 0 : i32
    return %arg0, %c0_i32 : i32, i32
  }
  func.func @transform_1(%arg0: i32) -> (i32, i32) {
    %c0_i32 = arith.constant 0 : i32
    %c0_i32_0 = arith.constant 0 : i32
    return %arg0, %c0_i32 : i32, i32
  }
  func.func @transform_2(%arg0: i32) -> (i32, i32) {
    %c0_i32 = arith.constant 0 : i32
    %c0_i32_0 = arith.constant 0 : i32
    %c0_i32_1 = arith.constant 0 : i32
    return %c0_i32, %c0_i32_0 : i32, i32
  }
  func.func @transform_3(%arg0: i32) -> (i32, i32) {
    %c0_i32 = arith.constant 0 : i32
    %c0_i32_0 = arith.constant 0 : i32
    %c0_i32_1 = arith.constant 0 : i32
    return %c0_i32, %c0_i32_0 : i32, i32
  }
  func.func @transform_4(%arg0: i32) -> (i32, i32) {
    %c0_i32 = arith.constant 0 : i32
    %c0_i32_0 = arith.constant 0 : i32
    return %arg0, %c0_i32 : i32, i32
  }
}

</mosaic_0001>

<llo_original>
// kernel: tpu_custom_call.1
$region0: #{tpu_custom_call.1}
  #allocation0 [shape = 'u32[]', space=smem, size = 0x4, offset = 0x4, fixed_abs, tag = 'smem constant byte address 0x4 - core index']
  #allocation1 [shape = 'u32[144,128]{1,0:T(1,128)}', space=vmem, size = 0x12000, scoped, tag = 'internal scratch']
  %s0 = inlined_call_operand.vmem [shape: f32[256,128], index: 0, kind: input, shape index: {}]
  %s1 = inlined_call_operand.vmem [shape: f32[256,6], index: 1, kind: input, shape index: {}]
  %s2 = inlined_call_operand.vmem [shape: f32[128,192], index: 2, kind: input, shape index: {}]
  %s3 = inlined_call_operand.vmem [shape: f32[1,128], index: 3, kind: input, shape index: {}]
  %s4 = inlined_call_operand.hbm [shape: f32[256,128], index: 4, kind: output, shape index: {}]
  %s5 = sld [smem:[#allocation0]]
  $region26: #{tpu_custom_call.1} parent=0
    _
  %s7 = ssub.s32 1, %s5
  %s8 = scalar_select 0, %s7, %s5
  $region1: #{tpu_custom_call.1} parent=0
    #allocation2 [shape = 'u8[131072]{0}', space=vmem, size = 0x20000, scoped, tag = 'output window, operand 0, single buffered']
    #allocation3 [shape = 's32[1]{0}', space=sflag, size = 0x4, scoped, tag = 'scoped memory for tpu_custom_call.1']
    %9 = vsyncpa [#allocation3], 0
    // Predicated region
    $region2: #{tpu_custom_call.1} parent=1 // pred_check
      _
    $region3: #{tpu_custom_call.1} parent=1 // pred_check_branch
      %11 = sbr.rel (0) target = $region5
    $region4: #{tpu_custom_call.1} parent=1 // pred_region
      _
    $region5: #{tpu_custom_call.1} parent=1 // pred_fallthru
      _
    // Predicated region
    $region6: #{tpu_custom_call.1} parent=1 // pred_check
      _
    $region7: #{tpu_custom_call.1} parent=1 // pred_check_branch
      %13 = sbr.rel (0) target = $region9
    $region8: #{tpu_custom_call.1} parent=1 // pred_region
      _
    $region9: #{tpu_custom_call.1} parent=1 // pred_fallthru
      _
    // Predicated region
    $region10: #{tpu_custom_call.1} parent=1 // pred_check
      _
    $region11: #{tpu_custom_call.1} parent=1 // pred_check_branch
      %15 = sbr.rel (0) target = $region13
    $region12: #{tpu_custom_call.1} parent=1 // pred_region
      _
    $region13: #{tpu_custom_call.1} parent=1 // pred_fallthru
      _
    // Predicated region
    $region14: #{tpu_custom_call.1} parent=1 // pred_check
      _
    $region15: #{tpu_custom_call.1} parent=1 // pred_check_branch
      %17 = sbr.rel (0) target = $region17
    $region16: #{tpu_custom_call.1} parent=1 // pred_region
      _
    $region17: #{tpu_custom_call.1} parent=1 // pred_fallthru
      _
    %v18 = vld [vmem:[%s0] sm:$0xff]
    %v19 = vld [vmem:[%s0 + $0x8] sm:$0xff]
    %v20 = vld [vmem:[%s0 + $0x10] sm:$0xff]
    %v21 = vld [vmem:[%s0 + $0x18] sm:$0xff]
    %v22 = vld [vmem:[%s0 + $0x20] sm:$0xff]
    %v23 = vld [vmem:[%s0 + $0x28] sm:$0xff]
    %v24 = vld [vmem:[%s0 + $0x30] sm:$0xff]
    %v25 = vld [vmem:[%s0 + $0x38] sm:$0xff]
    %v26 = vld [vmem:[%s0 + $0x40] sm:$0xff]
    %v27 = vld [vmem:[%s0 + $0x48] sm:$0xff]
    %v28 = vld [vmem:[%s0 + $0x50] sm:$0xff]
    %v29 = vld [vmem:[%s0 + $0x58] sm:$0xff]
    %v30 = vld [vmem:[%s0 + $0x60] sm:$0xff]
    %v31 = vld [vmem:[%s0 + $0x68] sm:$0xff]
    %v32 = vld [vmem:[%s0 + $0x70] sm:$0xff]
    %v33 = vld [vmem:[%s0 + $0x78] sm:$0xff]
    %v34 = vld [vmem:[%s0 + $0x80] sm:$0xff]
    %v35 = vld [vmem:[%s0 + $0x88] sm:$0xff]
    %v36 = vld [vmem:[%s0 + $0x90] sm:$0xff]
    %v37 = vld [vmem:[%s0 + $0x98] sm:$0xff]
    %v38 = vld [vmem:[%s0 + $0xa0] sm:$0xff]
    %v39 = vld [vmem:[%s0 + $0xa8] sm:$0xff]
    %v40 = vld [vmem:[%s0 + $0xb0] sm:$0xff]
    %v41 = vld [vmem:[%s0 + $0xb8] sm:$0xff]
    %v42 = vld [vmem:[%s0 + $0xc0] sm:$0xff]
    %v43 = vld [vmem:[%s0 + $0xc8] sm:$0xff]
    %v44 = vld [vmem:[%s0 + $0xd0] sm:$0xff]
    %v45 = vld [vmem:[%s0 + $0xd8] sm:$0xff]
    %v46 = vld [vmem:[%s0 + $0xe0] sm:$0xff]
    %v47 = vld [vmem:[%s0 + $0xe8] sm:$0xff]
    %v48 = vld [vmem:[%s0 + $0xf0] sm:$0xff]
    %v49 = vld [vmem:[%s0 + $0xf8] sm:$0xff]
    %v50 = vld [vmem:[%s1] sm:$0xff]
    %v51 = vld [vmem:[%s1 + $0x8] sm:$0xff]
    %v52 = vld [vmem:[%s1 + $0x10] sm:$0xff]
    %v53 = vld [vmem:[%s1 + $0x18] sm:$0xff]
    %v54 = vld [vmem:[%s1 + $0x20] sm:$0xff]
    %v55 = vld [vmem:[%s1 + $0x28] sm:$0xff]
    %v56 = vld [vmem:[%s1 + $0x30] sm:$0xff]
    %v57 = vld [vmem:[%s1 + $0x38] sm:$0xff]
    %v58 = vld [vmem:[%s1 + $0x40] sm:$0xff]
    %v59 = vld [vmem:[%s1 + $0x48] sm:$0xff]
    %v60 = vld [vmem:[%s1 + $0x50] sm:$0xff]
    %v61 = vld [vmem:[%s1 + $0x58] sm:$0xff]
    %v62 = vld [vmem:[%s1 + $0x60] sm:$0xff]
    %v63 = vld [vmem:[%s1 + $0x68] sm:$0xff]
    %v64 = vld [vmem:[%s1 + $0x70] sm:$0xff]
    %v65 = vld [vmem:[%s1 + $0x78] sm:$0xff]
    %v66 = vld [vmem:[%s1 + $0x80] sm:$0xff]
    %v67 = vld [vmem:[%s1 + $0x88] sm:$0xff]
    %v68 = vld [vmem:[%s1 + $0x90] sm:$0xff]
    %v69 = vld [vmem:[%s1 + $0x98] sm:$0xff]
    %v70 = vld [vmem:[%s1 + $0xa0] sm:$0xff]
    %v71 = vld [vmem:[%s1 + $0xa8] sm:$0xff]
    %v72 = vld [vmem:[%s1 + $0xb0] sm:$0xff]
    %v73 = vld [vmem:[%s1 + $0xb8] sm:$0xff]
    %v74 = vld [vmem:[%s1 + $0xc0] sm:$0xff]
    %v75 = vld [vmem:[%s1 + $0xc8] sm:$0xff]
    %v76 = vld [vmem:[%s1 + $0xd0] sm:$0xff]
    %v77 = vld [vmem:[%s1 + $0xd8] sm:$0xff]
    %v78 = vld [vmem:[%s1 + $0xe0] sm:$0xff]
    %v79 = vld [vmem:[%s1 + $0xe8] sm:$0xff]
    %v80 = vld [vmem:[%s1 + $0xf0] sm:$0xff]
    %v81 = vld [vmem:[%s1 + $0xf8] sm:$0xff]
    %v82 = vld [vmem:[%s2] sm:$0xff]
    %v83 = vld [vmem:[%s2 + $0x8] sm:$0xff]
    %v84 = vld [vmem:[%s2 + $0x10] sm:$0xff]
    %v85 = vld [vmem:[%s2 + $0x18] sm:$0xff]
    %v86 = vld [vmem:[%s2 + $0x20] sm:$0xff]
    %v87 = vld [vmem:[%s2 + $0x28] sm:$0xff]
    %v88 = vld [vmem:[%s2 + $0x30] sm:$0xff]
    %v89 = vld [vmem:[%s2 + $0x38] sm:$0xff]
    %v90 = vld [vmem:[%s2 + $0x40] sm:$0xff]
    %v91 = vld [vmem:[%s2 + $0x48] sm:$0xff]
    %v92 = vld [vmem:[%s2 + $0x50] sm:$0xff]
    %v93 = vld [vmem:[%s2 + $0x58] sm:$0xff]
    %v94 = vld [vmem:[%s2 + $0x60] sm:$0xff]
    %v95 = vld [vmem:[%s2 + $0x68] sm:$0xff]
    %v96 = vld [vmem:[%s2 + $0x70] sm:$0xff]
    %v97 = vld [vmem:[%s2 + $0x78] sm:$0xff]
    %v98 = vld [vmem:[%s2 + $0x80] sm:$0xff]
    %v99 = vld [vmem:[%s2 + $0x88] sm:$0xff]
    %v100 = vld [vmem:[%s2 + $0x90] sm:$0xff]
    %v101 = vld [vmem:[%s2 + $0x98] sm:$0xff]
    %v102 = vld [vmem:[%s2 + $0xa0] sm:$0xff]
    %v103 = vld [vmem:[%s2 + $0xa8] sm:$0xff]
    %v104 = vld [vmem:[%s2 + $0xb0] sm:$0xff]
    %v105 = vld [vmem:[%s2 + $0xb8] sm:$0xff]
    %v106 = vld [vmem:[%s2 + $0xc0] sm:$0xff]
    %v107 = vld [vmem:[%s2 + $0xc8] sm:$0xff]
    %v108 = vld [vmem:[%s2 + $0xd0] sm:$0xff]
    %v109 = vld [vmem:[%s2 + $0xd8] sm:$0xff]
    %v110 = vld [vmem:[%s2 + $0xe0] sm:$0xff]
    %v111 = vld [vmem:[%s2 + $0xe8] sm:$0xff]
    %v112 = vld [vmem:[%s2 + $0xf0] sm:$0xff]
    %v113 = vld [vmem:[%s2 + $0xf8] sm:$0xff]
    %114 = vmatprep.subr.mxu0 %v83
    %115 = vmatpush1.msra.mxu0 %v82
    %116 = vmatprep.subr.mxu0 %v85
    %117 = vmatpush1.msra.mxu0 %v84
    %118 = vmatprep.subr.mxu0 %v87
    %119 = vmatpush1.msra.mxu0 %v86
    %120 = vmatprep.subr.mxu0 %v89
    %121 = vmatpush1.msra.mxu0 %v88
    %122 = vmatprep.subr.mxu0 %v91
    %123 = vmatpush1.msra.mxu0 %v90
    %124 = vmatprep.subr.mxu0 %v93
    %125 = vmatpush1.msra.mxu0 %v92
    %126 = vmatprep.subr.mxu0 %v95
    %127 = vmatpush1.msra.mxu0 %v94
    %128 = vmatprep.subr.mxu0 %v97
    %129 = vmatpush1.msra.mxu0 %v96
    %130 = vmatprep.subr.mxu0 %v99
    %131 = vmatpush1.msra.mxu0 %v98
    %132 = vmatprep.subr.mxu0 %v101
    %133 = vmatpush1.msra.mxu0 %v100
    %134 = vmatprep.subr.mxu0 %v103
    %135 = vmatpush1.msra.mxu0 %v102
    %136 = vmatprep.subr.mxu0 %v105
    %137 = vmatpush1.msra.mxu0 %v104
    %138 = vmatprep.subr.mxu0 %v107
    %139 = vmatpush1.msra.mxu0 %v106
    %140 = vmatprep.subr.mxu0 %v109
    %141 = vmatpush1.msra.mxu0 %v108
    %142 = vmatprep.subr.mxu0 %v111
    %143 = vmatpush1.msra.mxu0 %v110
    %144 = vmatprep.subr.mxu0 %v113
    %145 = vmatpush1.msra.mxu0 %v112
    %146 = vmatprep.subr.mxu0 0.0
    %147 = vmatpush1.msra.mxu0 0.0
    %148 = vmatprep.subr.mxu0 0.0
    %149 = vmatpush1.msra.mxu0 0.0
    %150 = vmatprep.subr.mxu0 0.0
    %151 = vmatpush1.msra.mxu0 0.0
    %152 = vmatprep.subr.mxu0 0.0
    %153 = vmatpush1.msra.mxu0 0.0
    %154 = vmatprep.subr.mxu0 0.0
    %155 = vmatpush1.msra.mxu0 0.0
    %156 = vmatprep.subr.mxu0 0.0
    %157 = vmatpush1.msra.mxu0 0.0
    %158 = vmatprep.subr.mxu0 0.0
    %159 = vmatpush1.msra.mxu0 0.0
    %160 = vmatprep.subr.mxu0 0.0
    %161 = vmatpush1.msra.mxu0 0.0
    %162 = vmatprep.subr.mxu0 0.0
    %163 = vmatpush1.msra.mxu0 0.0
    %164 = vmatprep.subr.mxu0 0.0
    %165 = vmatpush1.msra.mxu0 0.0
    %166 = vmatprep.subr.mxu0 0.0
    %167 = vmatpush1.msra.mxu0 0.0
    %168 = vmatprep.subr.mxu0 0.0
    %169 = vmatpush1.msra.mxu0 0.0
    %170 = vmatprep.subr.mxu0 0.0
    %171 = vmatpush1.msra.mxu0 0.0
    %172 = vmatprep.subr.mxu0 0.0
    %173 = vmatpush1.msra.mxu0 0.0
    %174 = vmatprep.subr.mxu0 0.0
    %175 = vmatpush1.msra.mxu0 0.0
    %176 = vmatprep.subr.mxu0 0.0
    %177 = vmatpush1.msra.mxu0 0.0
    %178 = vmatprep.mubr.f32.mxu0 0.0
    %179 = vmatmul.mubr.f32.gmra.mrb[0].mxu0 %v18
    %v180 = vpop.f32.mrb[0].mxu0
    %v181 = vadd.f32 0.0, %v180
    %v182 = vpop.f32.mrb[0].mxu0
    %v183 = vadd.f32 0.0, %v182
    %184 = vmatprep.mubr.f32.mxu0 0.0
    %185 = vmatmul.mubr.f32.gmra.mrb[0].mxu0 %v19
    %v186 = vpop.f32.mrb[0].mxu0
    %v187 = vadd.f32 0.0, %v186
    %v188 = vpop.f32.mrb[0].mxu0
    %v189 = vadd.f32 0.0, %v188
    %190 = vmatprep.mubr.f32.mxu0 0.0
    %191 = vmatmul.mubr.f32.gmra.mrb[0].mxu0 %v20
    %v192 = vpop.f32.mrb[0].mxu0
    %v193 = vadd.f32 0.0, %v192
    %v194 = vpop.f32.mrb[0].mxu0
    %v195 = vadd.f32 0.0, %v194
    %196 = vmatprep.mubr.f32.mxu0 0.0
    %197 = vmatmul.mubr.f32.gmra.mrb[0].mxu0 %v21
    %v198 = vpop.f32.mrb[0].mxu0
    %v199 = vadd.f32 0.0, %v198
    %v200 = vpop.f32.mrb[0].mxu0
    %v201 = vadd.f32 0.0, %v200
    %202 = vmatprep.mubr.f32.mxu0 0.0
    %203 = vmatmul.mubr.f32.gmra.mrb[0].mxu0 %v22
    %v204 = vpop.f32.mrb[0].mxu0
    %v205 = vadd.f32 0.0, %v204
    %v206 = vpop.f32.mrb[0].mxu0
    %v207 = vadd.f32 0.0, %v206
    %208 = vmatprep.mubr.f32.mxu0 0.0
    %209 = vmatmul.mubr.f32.gmra.mrb[0].mxu0 %v23
    %v210 = vpop.f32.mrb[0].mxu0
    %v211 = vadd.f32 0.0, %v210
    %v212 = vpop.f32.mrb[0].mxu0
    %v213 = vadd.f32 0.0, %v212
    %214 = vmatprep.mubr.f32.mxu0 0.0
    %215 = vmatmul.mubr.f32.gmra.mrb[0].mxu0 %v24
    %v216 = vpop.f32.mrb[0].mxu0
    %v217 = vadd.f32 0.0, %v216
    %v218 = vpop.f32.mrb[0].mxu0
    %v219 = vadd.f32 0.0, %v218
    %220 = vmatprep.mubr.f32.mxu0 0.0
    %221 = vmatmul.mubr.f32.gmra.mrb[0].mxu0 %v25
    %v222 = vpop.f32.mrb[0].mxu0
    %v223 = vadd.f32 0.0, %v222
    %v224 = vpop.f32.mrb[0].mxu0
    %v225 = vadd.f32 0.0, %v224
    %226 = vmatprep.mubr.f32.mxu0 0.0
    %227 = vmatmul.mubr.f32.gmra.mrb[0].mxu0 %v26
    %v228 = vpop.f32.mrb[0].mxu0
    %v229 = vadd.f32 0.0, %v228
    %v230 = vpop.f32.mrb[0].mxu0
    %v231 = vadd.f32 0.0, %v230
    %232 = vmatprep.mubr.f32.mxu0 0.0
    %233 = vmatmul.mubr.f32.gmra.mrb[0].mxu0 %v27
    %v234 = vpop.f32.mrb[0].mxu0
    %v235 = vadd.f32 0.0, %v234
    %v236 = vpop.f32.mrb[0].mxu0
    %v237 = vadd.f32 0.0, %v236
    %238 = vmatprep.mubr.f32.mxu0 0.0
    %239 = vmatmul.mubr.f32.gmra.mrb[0].mxu0 %v28
    %v240 = vpop.f32.mrb[0].mxu0
    %v241 = vadd.f32 0.0, %v240
    %v242 = vpop.f32.mrb[0].mxu0
    %v243 = vadd.f32 0.0, %v242
    %244 = vmatprep.mubr.f32.mxu0 0.0
    %245 = vmatmul.mubr.f32.gmra.mrb[0].mxu0 %v29
    %v246 = vpop.f32.mrb[0].mxu0
    %v247 = vadd.f32 0.0, %v246
    %v248 = vpop.f32.mrb[0].mxu0
    %v249 = vadd.f32 0.0, %v248
    %250 = vmatprep.mubr.f32.mxu0 0.0
    %251 = vmatmul.mubr.f32.gmra.mrb[0].mxu0 %v30
    %v252 = vpop.f32.mrb[0].mxu0
    %v253 = vadd.f32 0.0, %v252
    %v254 = vpop.f32.mrb[0].mxu0
    %v255 = vadd.f32 0.0, %v254
    %256 = vmatprep.mubr.f32.mxu0 0.0
    %257 = vmatmul.mubr.f32.gmra.mrb[0].mxu0 %v31
    %v258 = vpop.f32.mrb[0].mxu0
    %v259 = vadd.f32 0.0, %v258
    %v260 = vpop.f32.mrb[0].mxu0
    %v261 = vadd.f32 0.0, %v260
    %262 = vmatprep.mubr.f32.mxu0 0.0
    %263 = vmatmul.mubr.f32.gmra.mrb[0].mxu0 %v32
    %v264 = vpop.f32.mrb[0].mxu0
    %v265 = vadd.f32 0.0, %v264
    %v266 = vpop.f32.mrb[0].mxu0
    %v267 = vadd.f32 0.0, %v266
    %268 = vmatprep.mubr.f32.mxu0 0.0
    %269 = vmatmul.mubr.f32.gmra.mrb[0].mxu0 %v33
    %v270 = vpop.f32.mrb[0].mxu0
    %v271 = vadd.f32 0.0, %v270
    %v272 = vpop.f32.mrb[0].mxu0
    %v273 = vadd.f32 0.0, %v272
    %274 = vmatprep.mubr.f32.mxu0 0.0
    %275 = vmatmul.mubr.f32.gmra.mrb[0].mxu0 %v34
    %v276 = vpop.f32.mrb[0].mxu0
    %v277 = vadd.f32 0.0, %v276
    %v278 = vpop.f32.mrb[0].mxu0
    %v279 = vadd.f32 0.0, %v278
    %280 = vmatprep.mubr.f32.mxu0 0.0
    %281 = vmatmul.mubr.f32.gmra.mrb[0].mxu0 %v35
    %v282 = vpop.f32.mrb[0].mxu0
    %v283 = vadd.f32 0.0, %v282
    %v284 = vpop.f32.mrb[0].mxu0
    %v285 = vadd.f32 0.0, %v284
    %286 = vmatprep.mubr.f32.mxu0 0.0
    %287 = vmatmul.mubr.f32.gmra.mrb[0].mxu0 %v36
    %v288 = vpop.f32.mrb[0].mxu0
    %v289 = vadd.f32 0.0, %v288
    %v290 = vpop.f32.mrb[0].mxu0
    %v291 = vadd.f32 0.0, %v290
    %292 = vmatprep.mubr.f32.mxu0 0.0
    %293 = vmatmul.mubr.f32.gmra.mrb[0].mxu0 %v37
    %v294 = vpop.f32.mrb[0].mxu0
    %v295 = vadd.f32 0.0, %v294
    %v296 = vpop.f32.mrb[0].mxu0
    %v297 = vadd.f32 0.0, %v296
    %298 = vmatprep.mubr.f32.mxu0 0.0
    %299 = vmatmul.mubr.f32.gmra.mrb[0].mxu0 %v38
    %v300 = vpop.f32.mrb[0].mxu0
    %v301 = vadd.f32 0.0, %v300
    %v302 = vpop.f32.mrb[0].mxu0
    %v303 = vadd.f32 0.0, %v302
    %304 = vmatprep.mubr.f32.mxu0 0.0
    %305 = vmatmul.mubr.f32.gmra.mrb[0].mxu0 %v39
    %v306 = vpop.f32.mrb[0].mxu0
    %v307 = vadd.f32 0.0, %v306
    %v308 = vpop.f32.mrb[0].mxu0
    %v309 = vadd.f32 0.0, %v308
    %310 = vmatprep.mubr.f32.mxu0 0.0
    %311 = vmatmul.mubr.f32.gmra.mrb[0].mxu0 %v40
    %v312 = vpop.f32.mrb[0].mxu0
    %v313 = vadd.f32 0.0, %v312
    %v314 = vpop.f32.mrb[0].mxu0
    %v315 = vadd.f32 0.0, %v314
    %316 = vmatprep.mubr.f32.mxu0 0.0
    %317 = vmatmul.mubr.f32.gmra.mrb[0].mxu0 %v41
    %v318 = vpop.f32.mrb[0].mxu0
    %v319 = vadd.f32 0.0, %v318
    %v320 = vpop.f32.mrb[0].mxu0
    %v321 = vadd.f32 0.0, %v320
    %322 = vmatprep.mubr.f32.mxu0 0.0
    %323 = vmatmul.mubr.f32.gmra.mrb[0].mxu0 %v42
    %v324 = vpop.f32.mrb[0].mxu0
    %v325 = vadd.f32 0.0, %v324
    %v326 = vpop.f32.mrb[0].mxu0
    %v327 = vadd.f32 0.0, %v326
    %328 = vmatprep.mubr.f32.mxu0 0.0
    %329 = vmatmul.mubr.f32.gmra.mrb[0].mxu0 %v43
    %v330 = vpop.f32.mrb[0].mxu0
    %v331 = vadd.f32 0.0, %v330
    %v332 = vpop.f32.mrb[0].mxu0
    %v333 = vadd.f32 0.0, %v332
    %334 = vmatprep.mubr.f32.mxu0 0.0
    %335 = vmatmul.mubr.f32.gmra.mrb[0].mxu0 %v44
    %v336 = vpop.f32.mrb[0].mxu0
    %v337 = vadd.f32 0.0, %v336
    %v338 = vpop.f32.mrb[0].mxu0
    %v339 = vadd.f32 0.0, %v338
    %340 = vmatprep.mubr.f32.mxu0 0.0
    %341 = vmatmul.mubr.f32.gmra.mrb[0].mxu0 %v45
    %v342 = vpop.f32.mrb[0].mxu0
    %v343 = vadd.f32 0.0, %v342
    %v344 = vpop.f32.mrb[0].mxu0
    %v345 = vadd.f32 0.0, %v344
    %346 = vmatprep.mubr.f32.mxu0 0.0
    %347 = vmatmul.mubr.f32.gmra.mrb[0].mxu0 %v46
    %v348 = vpop.f32.mrb[0].mxu0
    %v349 = vadd.f32 0.0, %v348
    %v350 = vpop.f32.mrb[0].mxu0
    %v351 = vadd.f32 0.0, %v350
    %352 = vmatprep.mubr.f32.mxu0 0.0
    %353 = vmatmul.mubr.f32.gmra.mrb[0].mxu0 %v47
    %v354 = vpop.f32.mrb[0].mxu0
    %v355 = vadd.f32 0.0, %v354
    %v356 = vpop.f32.mrb[0].mxu0
    %v357 = vadd.f32 0.0, %v356
    %358 = vmatprep.mubr.f32.mxu0 0.0
    %359 = vmatmul.mubr.f32.gmra.mrb[0].mxu0 %v48
    %v360 = vpop.f32.mrb[0].mxu0
    %v361 = vadd.f32 0.0, %v360
    %v362 = vpop.f32.mrb[0].mxu0
    %v363 = vadd.f32 0.0, %v362
    %364 = vmatprep.mubr.f32.mxu0 0.0
    %365 = vmatmul.mubr.f32.gmra.mrb[0].mxu0 %v49
    %v366 = vpop.f32.mrb[0].mxu0
    %v367 = vadd.f32 0.0, %v366
    %v368 = vpop.f32.mrb[0].mxu0
    %v369 = vadd.f32 0.0, %v368
    %370 = vdwg.mxu0
    %v371 = vld [vmem:[%s3] sm:$0x1]
    %v373 = vlaneseq
    %v374 = vshrl.u32 %v373, 7
    %v375 = vsub.s32 0, %v374
    %v376 = vrot.slane %v371, %v375
    %v378 = vadd.f32 %v181, %v376
    %v379 = vadd.f32 %v187, %v376
    %v380 = vadd.f32 %v193, %v376
    %v381 = vadd.f32 %v199, %v376
    %v382 = vadd.f32 %v205, %v376
    %v383 = vadd.f32 %v211, %v376
    %v384 = vadd.f32 %v217, %v376
    %v385 = vadd.f32 %v223, %v376
    %v386 = vadd.f32 %v229, %v376
    %v387 = vadd.f32 %v235, %v376
    %v388 = vadd.f32 %v241, %v376
    %v389 = vadd.f32 %v247, %v376
    %v390 = vadd.f32 %v253, %v376
    %v391 = vadd.f32 %v259, %v376
    %v392 = vadd.f32 %v265, %v376
    %v393 = vadd.f32 %v271, %v376
    %v394 = vadd.f32 %v277, %v376
    %v395 = vadd.f32 %v283, %v376
    %v396 = vadd.f32 %v289, %v376
    %v397 = vadd.f32 %v295, %v376
    %v398 = vadd.f32 %v301, %v376
    %v399 = vadd.f32 %v307, %v376
    %v400 = vadd.f32 %v313, %v376
    %v401 = vadd.f32 %v319, %v376
    %v402 = vadd.f32 %v325, %v376
    %v403 = vadd.f32 %v331, %v376
    %v404 = vadd.f32 %v337, %v376
    %v405 = vadd.f32 %v343, %v376
    %v406 = vadd.f32 %v349, %v376
    %v407 = vadd.f32 %v355, %v376
    %v408 = vadd.f32 %v361, %v376
    %v409 = vadd.f32 %v367, %v376
    %411 = vset.pattern.permute.xlu0 0
    %412 = vperm.xlu0 %411, %v50
    %v413 = vpop.permute.xlu0 %412
    %416 = vset.pattern.permute.xlu0 0
    %417 = vperm.xlu0 %416, %v51
    %v418 = vpop.permute.xlu0 %417
    %421 = vset.pattern.permute.xlu0 0
    %422 = vperm.xlu0 %421, %v52
    %v423 = vpop.permute.xlu0 %422
    %426 = vset.pattern.permute.xlu0 0
    %427 = vperm.xlu0 %426, %v53
    %v428 = vpop.permute.xlu0 %427
    %431 = vset.pattern.permute.xlu0 0
    %432 = vperm.xlu0 %431, %v54
    %v433 = vpop.permute.xlu0 %432
    %436 = vset.pattern.permute.xlu0 0
    %437 = vperm.xlu0 %436, %v55
    %v438 = vpop.permute.xlu0 %437
    %441 = vset.pattern.permute.xlu0 0
    %442 = vperm.xlu0 %441, %v56
    %v443 = vpop.permute.xlu0 %442
    %446 = vset.pattern.permute.xlu0 0
    %447 = vperm.xlu0 %446, %v57
    %v448 = vpop.permute.xlu0 %447
    %451 = vset.pattern.permute.xlu0 0
    %452 = vperm.xlu0 %451, %v58
    %v453 = vpop.permute.xlu0 %452
    %456 = vset.pattern.permute.xlu0 0
    %457 = vperm.xlu0 %456, %v59
    %v458 = vpop.permute.xlu0 %457
    %461 = vset.pattern.permute.xlu0 0
    %462 = vperm.xlu0 %461, %v60
    %v463 = vpop.permute.xlu0 %462
    %466 = vset.pattern.permute.xlu0 0
    %467 = vperm.xlu0 %466, %v61
    %v468 = vpop.permute.xlu0 %467
    %471 = vset.pattern.permute.xlu0 0
    %472 = vperm.xlu0 %471, %v62
    %v473 = vpop.permute.xlu0 %472
    %476 = vset.pattern.permute.xlu0 0
    %477 = vperm.xlu0 %476, %v63
    %v478 = vpop.permute.xlu0 %477
    %481 = vset.pattern.permute.xlu0 0
    %482 = vperm.xlu0 %481, %v64
    %v483 = vpop.permute.xlu0 %482
    %486 = vset.pattern.permute.xlu0 0
    %487 = vperm.xlu0 %486, %v65
    %v488 = vpop.permute.xlu0 %487
    %491 = vset.pattern.permute.xlu0 0
    %492 = vperm.xlu0 %491, %v66
    %v493 = vpop.permute.xlu0 %492
    %496 = vset.pattern.permute.xlu0 0
    %497 = vperm.xlu0 %496, %v67
    %v498 = vpop.permute.xlu0 %497
    %501 = vset.pattern.permute.xlu0 0
    %502 = vperm.xlu0 %501, %v68
    %v503 = vpop.permute.xlu0 %502
    %506 = vset.pattern.permute.xlu0 0
    %507 = vperm.xlu0 %506, %v69
    %v508 = vpop.permute.xlu0 %507
    %511 = vset.pattern.permute.xlu0 0
    %512 = vperm.xlu0 %511, %v70
    %v513 = vpop.permute.xlu0 %512
    %516 = vset.pattern.permute.xlu0 0
    %517 = vperm.xlu0 %516, %v71
    %v518 = vpop.permute.xlu0 %517
    %521 = vset.pattern.permute.xlu0 0
    %522 = vperm.xlu0 %521, %v72
    %v523 = vpop.permute.xlu0 %522
    %526 = vset.pattern.permute.xlu0 0
    %527 = vperm.xlu0 %526, %v73
    %v528 = vpop.permute.xlu0 %527
    %531 = vset.pattern.permute.xlu0 0
    %532 = vperm.xlu0 %531, %v74
    %v533 = vpop.permute.xlu0 %532
    %536 = vset.pattern.permute.xlu0 0
    %537 = vperm.xlu0 %536, %v75
    %v538 = vpop.permute.xlu0 %537
    %541 = vset.pattern.permute.xlu0 0
    %542 = vperm.xlu0 %541, %v76
    %v543 = vpop.permute.xlu0 %542
    %546 = vset.pattern.permute.xlu0 0
    %547 = vperm.xlu0 %546, %v77
    %v548 = vpop.permute.xlu0 %547
    %551 = vset.pattern.permute.xlu0 0
    %552 = vperm.xlu0 %551, %v78
    %v553 = vpop.permute.xlu0 %552
    %556 = vset.pattern.permute.xlu0 0
    %557 = vperm.xlu0 %556, %v79
    %v558 = vpop.permute.xlu0 %557
    %561 = vset.pattern.permute.xlu0 0
    %562 = vperm.xlu0 %561, %v80
    %v563 = vpop.permute.xlu0 %562
    %566 = vset.pattern.permute.xlu0 0
    %567 = vperm.xlu0 %566, %v81
    %v568 = vpop.permute.xlu0 %567
    %v570 = vmul.f32 %v183, %v413
    %v571 = vmul.f32 %v189, %v418
    %v572 = vmul.f32 %v195, %v423
    %v573 = vmul.f32 %v201, %v428
    %v574 = vmul.f32 %v207, %v433
    %v575 = vmul.f32 %v213, %v438
    %v576 = vmul.f32 %v219, %v443
    %v577 = vmul.f32 %v225, %v448
    %v578 = vmul.f32 %v231, %v453
    %v579 = vmul.f32 %v237, %v458
    %v580 = vmul.f32 %v243, %v463
    %v581 = vmul.f32 %v249, %v468
    %v582 = vmul.f32 %v255, %v473
    %v583 = vmul.f32 %v261, %v478
    %v584 = vmul.f32 %v267, %v483
    %v585 = vmul.f32 %v273, %v488
    %v586 = vmul.f32 %v279, %v493
    %v587 = vmul.f32 %v285, %v498
    %v588 = vmul.f32 %v291, %v503
    %v589 = vmul.f32 %v297, %v508
    %v590 = vmul.f32 %v303, %v513
    %v591 = vmul.f32 %v309, %v518
    %v592 = vmul.f32 %v315, %v523
    %v593 = vmul.f32 %v321, %v528
    %v594 = vmul.f32 %v327, %v533
    %v595 = vmul.f32 %v333, %v538
    %v596 = vmul.f32 %v339, %v543
    %v597 = vmul.f32 %v345, %v548
    %v598 = vmul.f32 %v351, %v553
    %v599 = vmul.f32 %v357, %v558
    %v600 = vmul.f32 %v363, %v563
    %v601 = vmul.f32 %v369, %v568
    %vm602 = vcmp.eq.f32.partialorder %v50, 0.0
    %vm603 = vcmp.eq.f32.partialorder %v51, 0.0
    %vm604 = vcmp.eq.f32.partialorder %v52, 0.0
    %vm605 = vcmp.eq.f32.partialorder %v53, 0.0
    %vm606 = vcmp.eq.f32.partialorder %v54, 0.0
    %vm607 = vcmp.eq.f32.partialorder %v55, 0.0
    %vm608 = vcmp.eq.f32.partialorder %v56, 0.0
    %vm609 = vcmp.eq.f32.partialorder %v57, 0.0
    %vm610 = vcmp.eq.f32.partialorder %v58, 0.0
    %vm611 = vcmp.eq.f32.partialorder %v59, 0.0
    %vm612 = vcmp.eq.f32.partialorder %v60, 0.0
    %vm613 = vcmp.eq.f32.partialorder %v61, 0.0
    %vm614 = vcmp.eq.f32.partialorder %v62, 0.0
    %vm615 = vcmp.eq.f32.partialorder %v63, 0.0
    %vm616 = vcmp.eq.f32.partialorder %v64, 0.0
    %vm617 = vcmp.eq.f32.partialorder %v65, 0.0
    %vm618 = vcmp.eq.f32.partialorder %v66, 0.0
    %vm619 = vcmp.eq.f32.partialorder %v67, 0.0
    %vm620 = vcmp.eq.f32.partialorder %v68, 0.0
    %vm621 = vcmp.eq.f32.partialorder %v69, 0.0
    %vm622 = vcmp.eq.f32.partialorder %v70, 0.0
    %vm623 = vcmp.eq.f32.partialorder %v71, 0.0
    %vm624 = vcmp.eq.f32.partialorder %v72, 0.0
    %vm625 = vcmp.eq.f32.partialorder %v73, 0.0
    %vm626 = vcmp.eq.f32.partialorder %v74, 0.0
    %vm627 = vcmp.eq.f32.partialorder %v75, 0.0
    %vm628 = vcmp.eq.f32.partialorder %v76, 0.0
    %vm629 = vcmp.eq.f32.partialorder %v77, 0.0
    %vm630 = vcmp.eq.f32.partialorder %v78, 0.0
    %vm631 = vcmp.eq.f32.partialorder %v79, 0.0
    %vm632 = vcmp.eq.f32.partialorder %v80, 0.0
    %vm633 = vcmp.eq.f32.partialorder %v81, 0.0
    %v634 = vsel %vm602, 1, 0
    %v635 = vsel %vm603, 1, 0
    %v636 = vsel %vm604, 1, 0
    %v637 = vsel %vm605, 1, 0
    %v638 = vsel %vm606, 1, 0
    %v639 = vsel %vm607, 1, 0
    %v640 = vsel %vm608, 1, 0
    %v641 = vsel %vm609, 1, 0
    %v642 = vsel %vm610, 1, 0
    %v643 = vsel %vm611, 1, 0
    %v644 = vsel %vm612, 1, 0
    %v645 = vsel %vm613, 1, 0
    %v646 = vsel %vm614, 1, 0
    %v647 = vsel %vm615, 1, 0
    %v648 = vsel %vm616, 1, 0
    %v649 = vsel %vm617, 1, 0
    %v650 = vsel %vm618, 1, 0
    %v651 = vsel %vm619, 1, 0
    %v652 = vsel %vm620, 1, 0
    %v653 = vsel %vm621, 1, 0
    %v654 = vsel %vm622, 1, 0
    %v655 = vsel %vm623, 1, 0
    %v656 = vsel %vm624, 1, 0
    %v657 = vsel %vm625, 1, 0
    %v658 = vsel %vm626, 1, 0
    %v659 = vsel %vm627, 1, 0
    %v660 = vsel %vm628, 1, 0
    %v661 = vsel %vm629, 1, 0
    %v662 = vsel %vm630, 1, 0
    %v663 = vsel %vm631, 1, 0
    %v664 = vsel %vm632, 1, 0
    %v665 = vsel %vm633, 1, 0
    %v666 = vcvt.s32.f32 %v634
    %v667 = vcvt.s32.f32 %v635
    %v668 = vcvt.s32.f32 %v636
    %v669 = vcvt.s32.f32 %v637
    %v670 = vcvt.s32.f32 %v638
    %v671 = vcvt.s32.f32 %v639
    %v672 = vcvt.s32.f32 %v640
    %v673 = vcvt.s32.f32 %v641
    %v674 = vcvt.s32.f32 %v642
    %v675 = vcvt.s32.f32 %v643
    %v676 = vcvt.s32.f32 %v644
    %v677 = vcvt.s32.f32 %v645
    %v678 = vcvt.s32.f32 %v646
    %v679 = vcvt.s32.f32 %v647
    %v680 = vcvt.s32.f32 %v648
    %v681 = vcvt.s32.f32 %v649
    %v682 = vcvt.s32.f32 %v650
    %v683 = vcvt.s32.f32 %v651
    %v684 = vcvt.s32.f32 %v652
    %v685 = vcvt.s32.f32 %v653
    %v686 = vcvt.s32.f32 %v654
    %v687 = vcvt.s32.f32 %v655
    %v688 = vcvt.s32.f32 %v656
    %v689 = vcvt.s32.f32 %v657
    %v690 = vcvt.s32.f32 %v658
    %v691 = vcvt.s32.f32 %v659
    %v692 = vcvt.s32.f32 %v660
    %v693 = vcvt.s32.f32 %v661
    %v694 = vcvt.s32.f32 %v662
    %v695 = vcvt.s32.f32 %v663
    %v696 = vcvt.s32.f32 %v664
    %v697 = vcvt.s32.f32 %v665
    %699 = vset.pattern.permute.xlu0 1
    %700 = vperm.xlu0 %699, %v666
    %v701 = vpop.permute.xlu0 %700
    %704 = vset.pattern.permute.xlu0 1
    %705 = vperm.xlu0 %704, %v667
    %v706 = vpop.permute.xlu0 %705
    %709 = vset.pattern.permute.xlu0 1
    %710 = vperm.xlu0 %709, %v668
    %v711 = vpop.permute.xlu0 %710
    %714 = vset.pattern.permute.xlu0 1
    %715 = vperm.xlu0 %714, %v669
    %v716 = vpop.permute.xlu0 %715
    %719 = vset.pattern.permute.xlu0 1
    %720 = vperm.xlu0 %719, %v670
    %v721 = vpop.permute.xlu0 %720
    %724 = vset.pattern.permute.xlu0 1
    %725 = vperm.xlu0 %724, %v671
    %v726 = vpop.permute.xlu0 %725
    %729 = vset.pattern.permute.xlu0 1
    %730 = vperm.xlu0 %729, %v672
    %v731 = vpop.permute.xlu0 %730
    %734 = vset.pattern.permute.xlu0 1
    %735 = vperm.xlu0 %734, %v673
    %v736 = vpop.permute.xlu0 %735
    %739 = vset.pattern.permute.xlu0 1
    %740 = vperm.xlu0 %739, %v674
    %v741 = vpop.permute.xlu0 %740
    %744 = vset.pattern.permute.xlu0 1
    %745 = vperm.xlu0 %744, %v675
    %v746 = vpop.permute.xlu0 %745
    %749 = vset.pattern.permute.xlu0 1
    %750 = vperm.xlu0 %749, %v676
    %v751 = vpop.permute.xlu0 %750
    %754 = vset.pattern.permute.xlu0 1
    %755 = vperm.xlu0 %754, %v677
    %v756 = vpop.permute.xlu0 %755
    %759 = vset.pattern.permute.xlu0 1
    %760 = vperm.xlu0 %759, %v678
    %v761 = vpop.permute.xlu0 %760
    %764 = vset.pattern.permute.xlu0 1
    %765 = vperm.xlu0 %764, %v679
    %v766 = vpop.permute.xlu0 %765
    %769 = vset.pattern.permute.xlu0 1
    %770 = vperm.xlu0 %769, %v680
    %v771 = vpop.permute.xlu0 %770
    %774 = vset.pattern.permute.xlu0 1
    %775 = vperm.xlu0 %774, %v681
    %v776 = vpop.permute.xlu0 %775
    %779 = vset.pattern.permute.xlu0 1
    %780 = vperm.xlu0 %779, %v682
    %v781 = vpop.permute.xlu0 %780
    %784 = vset.pattern.permute.xlu0 1
    %785 = vperm.xlu0 %784, %v683
    %v786 = vpop.permute.xlu0 %785
    %789 = vset.pattern.permute.xlu0 1
    %790 = vperm.xlu0 %789, %v684
    %v791 = vpop.permute.xlu0 %790
    %794 = vset.pattern.permute.xlu0 1
    %795 = vperm.xlu0 %794, %v685
    %v796 = vpop.permute.xlu0 %795
    %799 = vset.pattern.permute.xlu0 1
    %800 = vperm.xlu0 %799, %v686
    %v801 = vpop.permute.xlu0 %800
    %804 = vset.pattern.permute.xlu0 1
    %805 = vperm.xlu0 %804, %v687
    %v806 = vpop.permute.xlu0 %805
    %809 = vset.pattern.permute.xlu0 1
    %810 = vperm.xlu0 %809, %v688
    %v811 = vpop.permute.xlu0 %810
    %814 = vset.pattern.permute.xlu0 1
    %815 = vperm.xlu0 %814, %v689
    %v816 = vpop.permute.xlu0 %815
    %819 = vset.pattern.permute.xlu0 1
    %820 = vperm.xlu0 %819, %v690
    %v821 = vpop.permute.xlu0 %820
    %824 = vset.pattern.permute.xlu0 1
    %825 = vperm.xlu0 %824, %v691
    %v826 = vpop.permute.xlu0 %825
    %829 = vset.pattern.permute.xlu0 1
    %830 = vperm.xlu0 %829, %v692
    %v831 = vpop.permute.xlu0 %830
    %834 = vset.pattern.permute.xlu0 1
    %835 = vperm.xlu0 %834, %v693
    %v836 = vpop.permute.xlu0 %835
    %839 = vset.pattern.permute.xlu0 1
    %840 = vperm.xlu0 %839, %v694
    %v841 = vpop.permute.xlu0 %840
    %844 = vset.pattern.permute.xlu0 1
    %845 = vperm.xlu0 %844, %v695
    %v846 = vpop.permute.xlu0 %845
    %849 = vset.pattern.permute.xlu0 1
    %850 = vperm.xlu0 %849, %v696
    %v851 = vpop.permute.xlu0 %850
    %854 = vset.pattern.permute.xlu0 1
    %855 = vperm.xlu0 %854, %v697
    %v856 = vpop.permute.xlu0 %855
    %v858 = vmul.f32 %v701, %v570
    %v859 = vmul.f32 %v706, %v571
    %v860 = vmul.f32 %v711, %v572
    %v861 = vmul.f32 %v716, %v573
    %v862 = vmul.f32 %v721, %v574
    %v863 = vmul.f32 %v726, %v575
    %v864 = vmul.f32 %v731, %v576
    %v865 = vmul.f32 %v736, %v577
    %v866 = vmul.f32 %v741, %v578
    %v867 = vmul.f32 %v746, %v579
    %v868 = vmul.f32 %v751, %v580
    %v869 = vmul.f32 %v756, %v581
    %v870 = vmul.f32 %v761, %v582
    %v871 = vmul.f32 %v766, %v583
    %v872 = vmul.f32 %v771, %v584
    %v873 = vmul.f32 %v776, %v585
    %v874 = vmul.f32 %v781, %v586
    %v875 = vmul.f32 %v786, %v587
    %v876 = vmul.f32 %v791, %v588
    %v877 = vmul.f32 %v796, %v589
    %v878 = vmul.f32 %v801, %v590
    %v879 = vmul.f32 %v806, %v591
    %v880 = vmul.f32 %v811, %v592
    %v881 = vmul.f32 %v816, %v593
    %v882 = vmul.f32 %v821, %v594
    %v883 = vmul.f32 %v826, %v595
    %v884 = vmul.f32 %v831, %v596
    %v885 = vmul.f32 %v836, %v597
    %v886 = vmul.f32 %v841, %v598
    %v887 = vmul.f32 %v846, %v599
    %v888 = vmul.f32 %v851, %v600
    %v889 = vmul.f32 %v856, %v601
    %890 = vset.pattern.permute.xlu0 2
    %891 = vperm.xlu0 %890, %v50
    %v892 = vpop.permute.xlu0 %891
    %894 = vset.pattern.permute.xlu0 2
    %895 = vperm.xlu0 %894, %v51
    %v896 = vpop.permute.xlu0 %895
    %898 = vset.pattern.permute.xlu0 2
    %899 = vperm.xlu0 %898, %v52
    %v900 = vpop.permute.xlu0 %899
    %902 = vset.pattern.permute.xlu0 2
    %903 = vperm.xlu0 %902, %v53
    %v904 = vpop.permute.xlu0 %903
    %906 = vset.pattern.permute.xlu0 2
    %907 = vperm.xlu0 %906, %v54
    %v908 = vpop.permute.xlu0 %907
    %910 = vset.pattern.permute.xlu0 2
    %911 = vperm.xlu0 %910, %v55
    %v912 = vpop.permute.xlu0 %911
    %914 = vset.pattern.permute.xlu0 2
    %915 = vperm.xlu0 %914, %v56
    %v916 = vpop.permute.xlu0 %915
    %918 = vset.pattern.permute.xlu0 2
    %919 = vperm.xlu0 %918, %v57
    %v920 = vpop.permute.xlu0 %919
    %922 = vset.pattern.permute.xlu0 2
    %923 = vperm.xlu0 %922, %v58
    %v924 = vpop.permute.xlu0 %923
    %926 = vset.pattern.permute.xlu0 2
    %927 = vperm.xlu0 %926, %v59
    %v928 = vpop.permute.xlu0 %927
    %930 = vset.pattern.permute.xlu0 2
    %931 = vperm.xlu0 %930, %v60
    %v932 = vpop.permute.xlu0 %931
    %934 = vset.pattern.permute.xlu0 2
    %935 = vperm.xlu0 %934, %v61
    %v936 = vpop.permute.xlu0 %935
    %938 = vset.pattern.permute.xlu0 2
    %939 = vperm.xlu0 %938, %v62
    %v940 = vpop.permute.xlu0 %939
    %942 = vset.pattern.permute.xlu0 2
    %943 = vperm.xlu0 %942, %v63
    %v944 = vpop.permute.xlu0 %943
    %946 = vset.pattern.permute.xlu0 2
    %947 = vperm.xlu0 %946, %v64
    %v948 = vpop.permute.xlu0 %947
    %950 = vset.pattern.permute.xlu0 2
    %951 = vperm.xlu0 %950, %v65
    %v952 = vpop.permute.xlu0 %951
    %954 = vset.pattern.permute.xlu0 2
    %955 = vperm.xlu0 %954, %v66
    %v956 = vpop.permute.xlu0 %955
    %958 = vset.pattern.permute.xlu0 2
    %959 = vperm.xlu0 %958, %v67
    %v960 = vpop.permute.xlu0 %959
    %962 = vset.pattern.permute.xlu0 2
    %963 = vperm.xlu0 %962, %v68
    %v964 = vpop.permute.xlu0 %963
    %966 = vset.pattern.permute.xlu0 2
    %967 = vperm.xlu0 %966, %v69
    %v968 = vpop.permute.xlu0 %967
    %970 = vset.pattern.permute.xlu0 2
    %971 = vperm.xlu0 %970, %v70
    %v972 = vpop.permute.xlu0 %971
    %974 = vset.pattern.permute.xlu0 2
    %975 = vperm.xlu0 %974, %v71
    %v976 = vpop.permute.xlu0 %975
    %978 = vset.pattern.permute.xlu0 2
    %979 = vperm.xlu0 %978, %v72
    %v980 = vpop.permute.xlu0 %979
    %982 = vset.pattern.permute.xlu0 2
    %983 = vperm.xlu0 %982, %v73
    %v984 = vpop.permute.xlu0 %983
    %986 = vset.pattern.permute.xlu0 2
    %987 = vperm.xlu0 %986, %v74
    %v988 = vpop.permute.xlu0 %987
    %990 = vset.pattern.permute.xlu0 2
    %991 = vperm.xlu0 %990, %v75
    %v992 = vpop.permute.xlu0 %991
    %994 = vset.pattern.permute.xlu0 2
    %995 = vperm.xlu0 %994, %v76
    %v996 = vpop.permute.xlu0 %995
    %998 = vset.pattern.permute.xlu0 2
    %999 = vperm.xlu0 %998, %v77
    %v1000 = vpop.permute.xlu0 %999
    %1002 = vset.pattern.permute.xlu0 2
    %1003 = vperm.xlu0 %1002, %v78
    %v1004 = vpop.permute.xlu0 %1003
    %1006 = vset.pattern.permute.xlu0 2
    %1007 = vperm.xlu0 %1006, %v79
    %v1008 = vpop.permute.xlu0 %1007
    %1010 = vset.pattern.permute.xlu0 2
    %1011 = vperm.xlu0 %1010, %v80
    %v1012 = vpop.permute.xlu0 %1011
    %1014 = vset.pattern.permute.xlu0 2
    %1015 = vperm.xlu0 %1014, %v81
    %v1016 = vpop.permute.xlu0 %1015
    %v1018 = vmul.f32 %v892, %v570
    %v1019 = vmul.f32 %v896, %v571
    %v1020 = vmul.f32 %v900, %v572
    %v1021 = vmul.f32 %v904, %v573
    %v1022 = vmul.f32 %v908, %v574
    %v1023 = vmul.f32 %v912, %v575
    %v1024 = vmul.f32 %v916, %v576
    %v1025 = vmul.f32 %v920, %v577
    %v1026 = vmul.f32 %v924, %v578
    %v1027 = vmul.f32 %v928, %v579
    %v1028 = vmul.f32 %v932, %v580
    %v1029 = vmul.f32 %v936, %v581
    %v1030 = vmul.f32 %v940, %v582
    %v1031 = vmul.f32 %v944, %v583
    %v1032 = vmul.f32 %v948, %v584
    %v1033 = vmul.f32 %v952, %v585
    %v1034 = vmul.f32 %v956, %v586
    %v1035 = vmul.f32 %v960, %v587
    %v1036 = vmul.f32 %v964, %v588
    %v1037 = vmul.f32 %v968, %v589
    %v1038 = vmul.f32 %v972, %v590
    %v1039 = vmul.f32 %v976, %v591
    %v1040 = vmul.f32 %v980, %v592
    %v1041 = vmul.f32 %v984, %v593
    %v1042 = vmul.f32 %v988, %v594
    %v1043 = vmul.f32 %v992, %v595
    %v1044 = vmul.f32 %v996, %v596
    %v1045 = vmul.f32 %v1000, %v597
    %v1046 = vmul.f32 %v1004, %v598
    %v1047 = vmul.f32 %v1008, %v599
    %v1048 = vmul.f32 %v1012, %v600
    %v1049 = vmul.f32 %v1016, %v601
    %1082 = vrot.lane.b32.xlu0 %v1018, 96
    %v1083 = vpop.permute.xlu0 %1082
    %1084 = vrot.lane.b32.xlu0 %v1019, 96
    %v1085 = vpop.permute.xlu0 %1084
    %1086 = vrot.lane.b32.xlu0 %v1020, 96
    %v1087 = vpop.permute.xlu0 %1086
    %1088 = vrot.lane.b32.xlu0 %v1021, 96
    %v1089 = vpop.permute.xlu0 %1088
    %1090 = vrot.lane.b32.xlu0 %v1022, 96
    %v1091 = vpop.permute.xlu0 %1090
    %1092 = vrot.lane.b32.xlu0 %v1023, 96
    %v1093 = vpop.permute.xlu0 %1092
    %1094 = vrot.lane.b32.xlu0 %v1024, 96
    %v1095 = vpop.permute.xlu0 %1094
    %1096 = vrot.lane.b32.xlu0 %v1025, 96
    %v1097 = vpop.permute.xlu0 %1096
    %1098 = vrot.lane.b32.xlu0 %v1026, 96
    %v1099 = vpop.permute.xlu0 %1098
    %1100 = vrot.lane.b32.xlu0 %v1027, 96
    %v1101 = vpop.permute.xlu0 %1100
    %1102 = vrot.lane.b32.xlu0 %v1028, 96
    %v1103 = vpop.permute.xlu0 %1102
    %1104 = vrot.lane.b32.xlu0 %v1029, 96
    %v1105 = vpop.permute.xlu0 %1104
    %1106 = vrot.lane.b32.xlu0 %v1030, 96
    %v1107 = vpop.permute.xlu0 %1106
    %1108 = vrot.lane.b32.xlu0 %v1031, 96
    %v1109 = vpop.permute.xlu0 %1108
    %1110 = vrot.lane.b32.xlu0 %v1032, 96
    %v1111 = vpop.permute.xlu0 %1110
    %1112 = vrot.lane.b32.xlu0 %v1033, 96
    %v1113 = vpop.permute.xlu0 %1112
    %1114 = vrot.lane.b32.xlu0 %v1034, 96
    %v1115 = vpop.permute.xlu0 %1114
    %1116 = vrot.lane.b32.xlu0 %v1035, 96
    %v1117 = vpop.permute.xlu0 %1116
    %1118 = vrot.lane.b32.xlu0 %v1036, 96
    %v1119 = vpop.permute.xlu0 %1118
    %1120 = vrot.lane.b32.xlu0 %v1037, 96
    %v1121 = vpop.permute.xlu0 %1120
    %1122 = vrot.lane.b32.xlu0 %v1038, 96
    %v1123 = vpop.permute.xlu0 %1122
    %1124 = vrot.lane.b32.xlu0 %v1039, 96
    %v1125 = vpop.permute.xlu0 %1124
    %1126 = vrot.lane.b32.xlu0 %v1040, 96
    %v1127 = vpop.permute.xlu0 %1126
    %1128 = vrot.lane.b32.xlu0 %v1041, 96
    %v1129 = vpop.permute.xlu0 %1128
    %1130 = vrot.lane.b32.xlu0 %v1042, 96
    %v1131 = vpop.permute.xlu0 %1130
    %1132 = vrot.lane.b32.xlu0 %v1043, 96
    %v1133 = vpop.permute.xlu0 %1132
    %1134 = vrot.lane.b32.xlu0 %v1044, 96
    %v1135 = vpop.permute.xlu0 %1134
    %1136 = vrot.lane.b32.xlu0 %v1045, 96
    %v1137 = vpop.permute.xlu0 %1136
    %1138 = vrot.lane.b32.xlu0 %v1046, 96
    %v1139 = vpop.permute.xlu0 %1138
    %1140 = vrot.lane.b32.xlu0 %v1047, 96
    %v1141 = vpop.permute.xlu0 %1140
    %1142 = vrot.lane.b32.xlu0 %v1048, 96
    %v1143 = vpop.permute.xlu0 %1142
    %1144 = vrot.lane.b32.xlu0 %v1049, 96
    %v1145 = vpop.permute.xlu0 %1144
    %v1178 = vadd.f32 %v858, %v1083
    %v1179 = vadd.f32 %v859, %v1085
    %v1180 = vadd.f32 %v860, %v1087
    %v1181 = vadd.f32 %v861, %v1089
    %v1182 = vadd.f32 %v862, %v1091
    %v1183 = vadd.f32 %v863, %v1093
    %v1184 = vadd.f32 %v864, %v1095
    %v1185 = vadd.f32 %v865, %v1097
    %v1186 = vadd.f32 %v866, %v1099
    %v1187 = vadd.f32 %v867, %v1101
    %v1188 = vadd.f32 %v868, %v1103
    %v1189 = vadd.f32 %v869, %v1105
    %v1190 = vadd.f32 %v870, %v1107
    %v1191 = vadd.f32 %v871, %v1109
    %v1192 = vadd.f32 %v872, %v1111
    %v1193 = vadd.f32 %v873, %v1113
    %v1194 = vadd.f32 %v874, %v1115
    %v1195 = vadd.f32 %v875, %v1117
    %v1196 = vadd.f32 %v876, %v1119
    %v1197 = vadd.f32 %v877, %v1121
    %v1198 = vadd.f32 %v878, %v1123
    %v1199 = vadd.f32 %v879, %v1125
    %v1200 = vadd.f32 %v880, %v1127
    %v1201 = vadd.f32 %v881, %v1129
    %v1202 = vadd.f32 %v882, %v1131
    %v1203 = vadd.f32 %v883, %v1133
    %v1204 = vadd.f32 %v884, %v1135
    %v1205 = vadd.f32 %v885, %v1137
    %v1206 = vadd.f32 %v886, %v1139
    %v1207 = vadd.f32 %v887, %v1141
    %v1208 = vadd.f32 %v888, %v1143
    %v1209 = vadd.f32 %v889, %v1145
    %vm1210 = vcmp.eq.f32.partialorder %v50, 1.0
    %vm1211 = vcmp.eq.f32.partialorder %v51, 1.0
    %vm1212 = vcmp.eq.f32.partialorder %v52, 1.0
    %vm1213 = vcmp.eq.f32.partialorder %v53, 1.0
    %vm1214 = vcmp.eq.f32.partialorder %v54, 1.0
    %vm1215 = vcmp.eq.f32.partialorder %v55, 1.0
    %vm1216 = vcmp.eq.f32.partialorder %v56, 1.0
    %vm1217 = vcmp.eq.f32.partialorder %v57, 1.0
    %vm1218 = vcmp.eq.f32.partialorder %v58, 1.0
    %vm1219 = vcmp.eq.f32.partialorder %v59, 1.0
    %vm1220 = vcmp.eq.f32.partialorder %v60, 1.0
    %vm1221 = vcmp.eq.f32.partialorder %v61, 1.0
    %vm1222 = vcmp.eq.f32.partialorder %v62, 1.0
    %vm1223 = vcmp.eq.f32.partialorder %v63, 1.0
    %vm1224 = vcmp.eq.f32.partialorder %v64, 1.0
    %vm1225 = vcmp.eq.f32.partialorder %v65, 1.0
    %vm1226 = vcmp.eq.f32.partialorder %v66, 1.0
    %vm1227 = vcmp.eq.f32.partialorder %v67, 1.0
    %vm1228 = vcmp.eq.f32.partialorder %v68, 1.0
    %vm1229 = vcmp.eq.f32.partialorder %v69, 1.0
    %vm1230 = vcmp.eq.f32.partialorder %v70, 1.0
    %vm1231 = vcmp.eq.f32.partialorder %v71, 1.0
    %vm1232 = vcmp.eq.f32.partialorder %v72, 1.0
    %vm1233 = vcmp.eq.f32.partialorder %v73, 1.0
    %vm1234 = vcmp.eq.f32.partialorder %v74, 1.0
    %vm1235 = vcmp.eq.f32.partialorder %v75, 1.0
    %vm1236 = vcmp.eq.f32.partialorder %v76, 1.0
    %vm1237 = vcmp.eq.f32.partialorder %v77, 1.0
    %vm1238 = vcmp.eq.f32.partialorder %v78, 1.0
    %vm1239 = vcmp.eq.f32.partialorder %v79, 1.0
    %vm1240 = vcmp.eq.f32.partialorder %v80, 1.0
    %vm1241 = vcmp.eq.f32.partialorder %v81, 1.0
    %v1242 = vsel %vm1210, 1, 0
    %v1243 = vsel %vm1211, 1, 0
    %v1244 = vsel %vm1212, 1, 0
    %v1245 = vsel %vm1213, 1, 0
    %v1246 = vsel %vm1214, 1, 0
    %v1247 = vsel %vm1215, 1, 0
    %v1248 = vsel %vm1216, 1, 0
    %v1249 = vsel %vm1217, 1, 0
    %v1250 = vsel %vm1218, 1, 0
    %v1251 = vsel %vm1219, 1, 0
    %v1252 = vsel %vm1220, 1, 0
    %v1253 = vsel %vm1221, 1, 0
    %v1254 = vsel %vm1222, 1, 0
    %v1255 = vsel %vm1223, 1, 0
    %v1256 = vsel %vm1224, 1, 0
    %v1257 = vsel %vm1225, 1, 0
    %v1258 = vsel %vm1226, 1, 0
    %v1259 = vsel %vm1227, 1, 0
    %v1260 = vsel %vm1228, 1, 0
    %v1261 = vsel %vm1229, 1, 0
    %v1262 = vsel %vm1230, 1, 0
    %v1263 = vsel %vm1231, 1, 0
    %v1264 = vsel %vm1232, 1, 0
    %v1265 = vsel %vm1233, 1, 0
    %v1266 = vsel %vm1234, 1, 0
    %v1267 = vsel %vm1235, 1, 0
    %v1268 = vsel %vm1236, 1, 0
    %v1269 = vsel %vm1237, 1, 0
    %v1270 = vsel %vm1238, 1, 0
    %v1271 = vsel %vm1239, 1, 0
    %v1272 = vsel %vm1240, 1, 0
    %v1273 = vsel %vm1241, 1, 0
    %v1274 = vcvt.s32.f32 %v1242
    %v1275 = vcvt.s32.f32 %v1243
    %v1276 = vcvt.s32.f32 %v1244
    %v1277 = vcvt.s32.f32 %v1245
    %v1278 = vcvt.s32.f32 %v1246
    %v1279 = vcvt.s32.f32 %v1247
    %v1280 = vcvt.s32.f32 %v1248
    %v1281 = vcvt.s32.f32 %v1249
    %v1282 = vcvt.s32.f32 %v1250
    %v1283 = vcvt.s32.f32 %v1251
    %v1284 = vcvt.s32.f32 %v1252
    %v1285 = vcvt.s32.f32 %v1253
    %v1286 = vcvt.s32.f32 %v1254
    %v1287 = vcvt.s32.f32 %v1255
    %v1288 = vcvt.s32.f32 %v1256
    %v1289 = vcvt.s32.f32 %v1257
    %v1290 = vcvt.s32.f32 %v1258
    %v1291 = vcvt.s32.f32 %v1259
    %v1292 = vcvt.s32.f32 %v1260
    %v1293 = vcvt.s32.f32 %v1261
    %v1294 = vcvt.s32.f32 %v1262
    %v1295 = vcvt.s32.f32 %v1263
    %v1296 = vcvt.s32.f32 %v1264
    %v1297 = vcvt.s32.f32 %v1265
    %v1298 = vcvt.s32.f32 %v1266
    %v1299 = vcvt.s32.f32 %v1267
    %v1300 = vcvt.s32.f32 %v1268
    %v1301 = vcvt.s32.f32 %v1269
    %v1302 = vcvt.s32.f32 %v1270
    %v1303 = vcvt.s32.f32 %v1271
    %v1304 = vcvt.s32.f32 %v1272
    %v1305 = vcvt.s32.f32 %v1273
    %1307 = vset.pattern.permute.xlu0 1
    %1308 = vperm.xlu0 %1307, %v1274
    %v1309 = vpop.permute.xlu0 %1308
    %1312 = vset.pattern.permute.xlu0 1
    %1313 = vperm.xlu0 %1312, %v1275
    %v1314 = vpop.permute.xlu0 %1313
    %1317 = vset.pattern.permute.xlu0 1
    %1318 = vperm.xlu0 %1317, %v1276
    %v1319 = vpop.permute.xlu0 %1318
    %1322 = vset.pattern.permute.xlu0 1
    %1323 = vperm.xlu0 %1322, %v1277
    %v1324 = vpop.permute.xlu0 %1323
    %1327 = vset.pattern.permute.xlu0 1
    %1328 = vperm.xlu0 %1327, %v1278
    %v1329 = vpop.permute.xlu0 %1328
    %1332 = vset.pattern.permute.xlu0 1
    %1333 = vperm.xlu0 %1332, %v1279
    %v1334 = vpop.permute.xlu0 %1333
    %1337 = vset.pattern.permute.xlu0 1
    %1338 = vperm.xlu0 %1337, %v1280
    %v1339 = vpop.permute.xlu0 %1338
    %1342 = vset.pattern.permute.xlu0 1
    %1343 = vperm.xlu0 %1342, %v1281
    %v1344 = vpop.permute.xlu0 %1343
    %1347 = vset.pattern.permute.xlu0 1
    %1348 = vperm.xlu0 %1347, %v1282
    %v1349 = vpop.permute.xlu0 %1348
    %1352 = vset.pattern.permute.xlu0 1
    %1353 = vperm.xlu0 %1352, %v1283
    %v1354 = vpop.permute.xlu0 %1353
    %1357 = vset.pattern.permute.xlu0 1
    %1358 = vperm.xlu0 %1357, %v1284
    %v1359 = vpop.permute.xlu0 %1358
    %1362 = vset.pattern.permute.xlu0 1
    %1363 = vperm.xlu0 %1362, %v1285
    %v1364 = vpop.permute.xlu0 %1363
    %1367 = vset.pattern.permute.xlu0 1
    %1368 = vperm.xlu0 %1367, %v1286
    %v1369 = vpop.permute.xlu0 %1368
    %1372 = vset.pattern.permute.xlu0 1
    %1373 = vperm.xlu0 %1372, %v1287
    %v1374 = vpop.permute.xlu0 %1373
    %1377 = vset.pattern.permute.xlu0 1
    %1378 = vperm.xlu0 %1377, %v1288
    %v1379 = vpop.permute.xlu0 %1378
    %1382 = vset.pattern.permute.xlu0 1
    %1383 = vperm.xlu0 %1382, %v1289
    %v1384 = vpop.permute.xlu0 %1383
    %1387 = vset.pattern.permute.xlu0 1
    %1388 = vperm.xlu0 %1387, %v1290
    %v1389 = vpop.permute.xlu0 %1388
    %1392 = vset.pattern.permute.xlu0 1
    %1393 = vperm.xlu0 %1392, %v1291
    %v1394 = vpop.permute.xlu0 %1393
    %1397 = vset.pattern.permute.xlu0 1
    %1398 = vperm.xlu0 %1397, %v1292
    %v1399 = vpop.permute.xlu0 %1398
    %1402 = vset.pattern.permute.xlu0 1
    %1403 = vperm.xlu0 %1402, %v1293
    %v1404 = vpop.permute.xlu0 %1403
    %1407 = vset.pattern.permute.xlu0 1
    %1408 = vperm.xlu0 %1407, %v1294
    %v1409 = vpop.permute.xlu0 %1408
    %1412 = vset.pattern.permute.xlu0 1
    %1413 = vperm.xlu0 %1412, %v1295
    %v1414 = vpop.permute.xlu0 %1413
    %1417 = vset.pattern.permute.xlu0 1
    %1418 = vperm.xlu0 %1417, %v1296
    %v1419 = vpop.permute.xlu0 %1418
    %1422 = vset.pattern.permute.xlu0 1
    %1423 = vperm.xlu0 %1422, %v1297
    %v1424 = vpop.permute.xlu0 %1423
    %1427 = vset.pattern.permute.xlu0 1
    %1428 = vperm.xlu0 %1427, %v1298
    %v1429 = vpop.permute.xlu0 %1428
    %1432 = vset.pattern.permute.xlu0 1
    %1433 = vperm.xlu0 %1432, %v1299
    %v1434 = vpop.permute.xlu0 %1433
    %1437 = vset.pattern.permute.xlu0 1
    %1438 = vperm.xlu0 %1437, %v1300
    %v1439 = vpop.permute.xlu0 %1438
    %1442 = vset.pattern.permute.xlu0 1
    %1443 = vperm.xlu0 %1442, %v1301
    %v1444 = vpop.permute.xlu0 %1443
    %1447 = vset.pattern.permute.xlu0 1
    %1448 = vperm.xlu0 %1447, %v1302
    %v1449 = vpop.permute.xlu0 %1448
    %1452 = vset.pattern.permute.xlu0 1
    %1453 = vperm.xlu0 %1452, %v1303
    %v1454 = vpop.permute.xlu0 %1453
    %1457 = vset.pattern.permute.xlu0 1
    %1458 = vperm.xlu0 %1457, %v1304
    %v1459 = vpop.permute.xlu0 %1458
    %1462 = vset.pattern.permute.xlu0 1
    %1463 = vperm.xlu0 %1462, %v1305
    %v1464 = vpop.permute.xlu0 %1463
    %v1466 = vmul.f32 %v1309, %v570
    %v1467 = vmul.f32 %v1314, %v571
    %v1468 = vmul.f32 %v1319, %v572
    %v1469 = vmul.f32 %v1324, %v573
    %v1470 = vmul.f32 %v1329, %v574
    %v1471 = vmul.f32 %v1334, %v575
    %v1472 = vmul.f32 %v1339, %v576
    %v1473 = vmul.f32 %v1344, %v577
    %v1474 = vmul.f32 %v1349, %v578
    %v1475 = vmul.f32 %v1354, %v579
    %v1476 = vmul.f32 %v1359, %v580
    %v1477 = vmul.f32 %v1364, %v581
    %v1478 = vmul.f32 %v1369, %v582
    %v1479 = vmul.f32 %v1374, %v583
    %v1480 = vmul.f32 %v1379, %v584
    %v1481 = vmul.f32 %v1384, %v585
    %v1482 = vmul.f32 %v1389, %v586
    %v1483 = vmul.f32 %v1394, %v587
    %v1484 = vmul.f32 %v1399, %v588
    %v1485 = vmul.f32 %v1404, %v589
    %v1486 = vmul.f32 %v1409, %v590
    %v1487 = vmul.f32 %v1414, %v591
    %v1488 = vmul.f32 %v1419, %v592
    %v1489 = vmul.f32 %v1424, %v593
    %v1490 = vmul.f32 %v1429, %v594
    %v1491 = vmul.f32 %v1434, %v595
    %v1492 = vmul.f32 %v1439, %v596
    %v1493 = vmul.f32 %v1444, %v597
    %v1494 = vmul.f32 %v1449, %v598
    %v1495 = vmul.f32 %v1454, %v599
    %v1496 = vmul.f32 %v1459, %v600
    %v1497 = vmul.f32 %v1464, %v601
    %1498 = vset.pattern.permute.xlu0 3
    %1499 = vperm.xlu0 %1498, %v50
    %v1500 = vpop.permute.xlu0 %1499
    %1502 = vset.pattern.permute.xlu0 3
    %1503 = vperm.xlu0 %1502, %v51
    %v1504 = vpop.permute.xlu0 %1503
    %1506 = vset.pattern.permute.xlu0 3
    %1507 = vperm.xlu0 %1506, %v52
    %v1508 = vpop.permute.xlu0 %1507
    %1510 = vset.pattern.permute.xlu0 3
    %1511 = vperm.xlu0 %1510, %v53
    %v1512 = vpop.permute.xlu0 %1511
    %1514 = vset.pattern.permute.xlu0 3
    %1515 = vperm.xlu0 %1514, %v54
    %v1516 = vpop.permute.xlu0 %1515
    %1518 = vset.pattern.permute.xlu0 3
    %1519 = vperm.xlu0 %1518, %v55
    %v1520 = vpop.permute.xlu0 %1519
    %1522 = vset.pattern.permute.xlu0 3
    %1523 = vperm.xlu0 %1522, %v56
    %v1524 = vpop.permute.xlu0 %1523
    %1526 = vset.pattern.permute.xlu0 3
    %1527 = vperm.xlu0 %1526, %v57
    %v1528 = vpop.permute.xlu0 %1527
    %1530 = vset.pattern.permute.xlu0 3
    %1531 = vperm.xlu0 %1530, %v58
    %v1532 = vpop.permute.xlu0 %1531
    %1534 = vset.pattern.permute.xlu0 3
    %1535 = vperm.xlu0 %1534, %v59
    %v1536 = vpop.permute.xlu0 %1535
    %1538 = vset.pattern.permute.xlu0 3
    %1539 = vperm.xlu0 %1538, %v60
    %v1540 = vpop.permute.xlu0 %1539
    %1542 = vset.pattern.permute.xlu0 3
    %1543 = vperm.xlu0 %1542, %v61
    %v1544 = vpop.permute.xlu0 %1543
    %1546 = vset.pattern.permute.xlu0 3
    %1547 = vperm.xlu0 %1546, %v62
    %v1548 = vpop.permute.xlu0 %1547
    %1550 = vset.pattern.permute.xlu0 3
    %1551 = vperm.xlu0 %1550, %v63
    %v1552 = vpop.permute.xlu0 %1551
    %1554 = vset.pattern.permute.xlu0 3
    %1555 = vperm.xlu0 %1554, %v64
    %v1556 = vpop.permute.xlu0 %1555
    %1558 = vset.pattern.permute.xlu0 3
    %1559 = vperm.xlu0 %1558, %v65
    %v1560 = vpop.permute.xlu0 %1559
    %1562 = vset.pattern.permute.xlu0 3
    %1563 = vperm.xlu0 %1562, %v66
    %v1564 = vpop.permute.xlu0 %1563
    %1566 = vset.pattern.permute.xlu0 3
    %1567 = vperm.xlu0 %1566, %v67
    %v1568 = vpop.permute.xlu0 %1567
    %1570 = vset.pattern.permute.xlu0 3
    %1571 = vperm.xlu0 %1570, %v68
    %v1572 = vpop.permute.xlu0 %1571
    %1574 = vset.pattern.permute.xlu0 3
    %1575 = vperm.xlu0 %1574, %v69
    %v1576 = vpop.permute.xlu0 %1575
    %1578 = vset.pattern.permute.xlu0 3
    %1579 = vperm.xlu0 %1578, %v70
    %v1580 = vpop.permute.xlu0 %1579
    %1582 = vset.pattern.permute.xlu0 3
    %1583 = vperm.xlu0 %1582, %v71
    %v1584 = vpop.permute.xlu0 %1583
    %1586 = vset.pattern.permute.xlu0 3
    %1587 = vperm.xlu0 %1586, %v72
    %v1588 = vpop.permute.xlu0 %1587
    %1590 = vset.pattern.permute.xlu0 3
    %1591 = vperm.xlu0 %1590, %v73
    %v1592 = vpop.permute.xlu0 %1591
    %1594 = vset.pattern.permute.xlu0 3
    %1595 = vperm.xlu0 %1594, %v74
    %v1596 = vpop.permute.xlu0 %1595
    %1598 = vset.pattern.permute.xlu0 3
    %1599 = vperm.xlu0 %1598, %v75
    %v1600 = vpop.permute.xlu0 %1599
    %1602 = vset.pattern.permute.xlu0 3
    %1603 = vperm.xlu0 %1602, %v76
    %v1604 = vpop.permute.xlu0 %1603
    %1606 = vset.pattern.permute.xlu0 3
    %1607 = vperm.xlu0 %1606, %v77
    %v1608 = vpop.permute.xlu0 %1607
    %1610 = vset.pattern.permute.xlu0 3
    %1611 = vperm.xlu0 %1610, %v78
    %v1612 = vpop.permute.xlu0 %1611
    %1614 = vset.pattern.permute.xlu0 3
    %1615 = vperm.xlu0 %1614, %v79
    %v1616 = vpop.permute.xlu0 %1615
    %1618 = vset.pattern.permute.xlu0 3
    %1619 = vperm.xlu0 %1618, %v80
    %v1620 = vpop.permute.xlu0 %1619
    %1622 = vset.pattern.permute.xlu0 3
    %1623 = vperm.xlu0 %1622, %v81
    %v1624 = vpop.permute.xlu0 %1623
    %v1626 = vmul.f32 %v1500, %v570
    %v1627 = vmul.f32 %v1504, %v571
    %v1628 = vmul.f32 %v1508, %v572
    %v1629 = vmul.f32 %v1512, %v573
    %v1630 = vmul.f32 %v1516, %v574
    %v1631 = vmul.f32 %v1520, %v575
    %v1632 = vmul.f32 %v1524, %v576
    %v1633 = vmul.f32 %v1528, %v577
    %v1634 = vmul.f32 %v1532, %v578
    %v1635 = vmul.f32 %v1536, %v579
    %v1636 = vmul.f32 %v1540, %v580
    %v1637 = vmul.f32 %v1544, %v581
    %v1638 = vmul.f32 %v1548, %v582
    %v1639 = vmul.f32 %v1552, %v583
    %v1640 = vmul.f32 %v1556, %v584
    %v1641 = vmul.f32 %v1560, %v585
    %v1642 = vmul.f32 %v1564, %v586
    %v1643 = vmul.f32 %v1568, %v587
    %v1644 = vmul.f32 %v1572, %v588
    %v1645 = vmul.f32 %v1576, %v589
    %v1646 = vmul.f32 %v1580, %v590
    %v1647 = vmul.f32 %v1584, %v591
    %v1648 = vmul.f32 %v1588, %v592
    %v1649 = vmul.f32 %v1592, %v593
    %v1650 = vmul.f32 %v1596, %v594
    %v1651 = vmul.f32 %v1600, %v595
    %v1652 = vmul.f32 %v1604, %v596
    %v1653 = vmul.f32 %v1608, %v597
    %v1654 = vmul.f32 %v1612, %v598
    %v1655 = vmul.f32 %v1616, %v599
    %v1656 = vmul.f32 %v1620, %v600
    %v1657 = vmul.f32 %v1624, %v601
    %1690 = vrot.lane.b32.xlu0 %v1626, 96
    %v1691 = vpop.permute.xlu0 %1690
    %1692 = vrot.lane.b32.xlu0 %v1627, 96
    %v1693 = vpop.permute.xlu0 %1692
    %1694 = vrot.lane.b32.xlu0 %v1628, 96
    %v1695 = vpop.permute.xlu0 %1694
    %1696 = vrot.lane.b32.xlu0 %v1629, 96
    %v1697 = vpop.permute.xlu0 %1696
    %1698 = vrot.lane.b32.xlu0 %v1630, 96
    %v1699 = vpop.permute.xlu0 %1698
    %1700 = vrot.lane.b32.xlu0 %v1631, 96
    %v1701 = vpop.permute.xlu0 %1700
    %1702 = vrot.lane.b32.xlu0 %v1632, 96
    %v1703 = vpop.permute.xlu0 %1702
    %1704 = vrot.lane.b32.xlu0 %v1633, 96
    %v1705 = vpop.permute.xlu0 %1704
    %1706 = vrot.lane.b32.xlu0 %v1634, 96
    %v1707 = vpop.permute.xlu0 %1706
    %1708 = vrot.lane.b32.xlu0 %v1635, 96
    %v1709 = vpop.permute.xlu0 %1708
    %1710 = vrot.lane.b32.xlu0 %v1636, 96
    %v1711 = vpop.permute.xlu0 %1710
    %1712 = vrot.lane.b32.xlu0 %v1637, 96
    %v1713 = vpop.permute.xlu0 %1712
    %1714 = vrot.lane.b32.xlu0 %v1638, 96
    %v1715 = vpop.permute.xlu0 %1714
    %1716 = vrot.lane.b32.xlu0 %v1639, 96
    %v1717 = vpop.permute.xlu0 %1716
    %1718 = vrot.lane.b32.xlu0 %v1640, 96
    %v1719 = vpop.permute.xlu0 %1718
    %1720 = vrot.lane.b32.xlu0 %v1641, 96
    %v1721 = vpop.permute.xlu0 %1720
    %1722 = vrot.lane.b32.xlu0 %v1642, 96
    %v1723 = vpop.permute.xlu0 %1722
    %1724 = vrot.lane.b32.xlu0 %v1643, 96
    %v1725 = vpop.permute.xlu0 %1724
    %1726 = vrot.lane.b32.xlu0 %v1644, 96
    %v1727 = vpop.permute.xlu0 %1726
    %1728 = vrot.lane.b32.xlu0 %v1645, 96
    %v1729 = vpop.permute.xlu0 %1728
    %1730 = vrot.lane.b32.xlu0 %v1646, 96
    %v1731 = vpop.permute.xlu0 %1730
    %1732 = vrot.lane.b32.xlu0 %v1647, 96
    %v1733 = vpop.permute.xlu0 %1732
    %1734 = vrot.lane.b32.xlu0 %v1648, 96
    %v1735 = vpop.permute.xlu0 %1734
    %1736 = vrot.lane.b32.xlu0 %v1649, 96
    %v1737 = vpop.permute.xlu0 %1736
    %1738 = vrot.lane.b32.xlu0 %v1650, 96
    %v1739 = vpop.permute.xlu0 %1738
    %1740 = vrot.lane.b32.xlu0 %v1651, 96
    %v1741 = vpop.permute.xlu0 %1740
    %1742 = vrot.lane.b32.xlu0 %v1652, 96
    %v1743 = vpop.permute.xlu0 %1742
    %1744 = vrot.lane.b32.xlu0 %v1653, 96
    %v1745 = vpop.permute.xlu0 %1744
    %1746 = vrot.lane.b32.xlu0 %v1654, 96
    %v1747 = vpop.permute.xlu0 %1746
    %1748 = vrot.lane.b32.xlu0 %v1655, 96
    %v1749 = vpop.permute.xlu0 %1748
    %1750 = vrot.lane.b32.xlu0 %v1656, 96
    %v1751 = vpop.permute.xlu0 %1750
    %1752 = vrot.lane.b32.xlu0 %v1657, 96
    %v1753 = vpop.permute.xlu0 %1752
    %v1786 = vadd.f32 %v1466, %v1691
    %v1787 = vadd.f32 %v1467, %v1693
    %v1788 = vadd.f32 %v1468, %v1695
    %v1789 = vadd.f32 %v1469, %v1697
    %v1790 = vadd.f32 %v1470, %v1699
    %v1791 = vadd.f32 %v1471, %v1701
    %v1792 = vadd.f32 %v1472, %v1703
    %v1793 = vadd.f32 %v1473, %v1705
    %v1794 = vadd.f32 %v1474, %v1707
    %v1795 = vadd.f32 %v1475, %v1709
    %v1796 = vadd.f32 %v1476, %v1711
    %v1797 = vadd.f32 %v1477, %v1713
    %v1798 = vadd.f32 %v1478, %v1715
    %v1799 = vadd.f32 %v1479, %v1717
    %v1800 = vadd.f32 %v1480, %v1719
    %v1801 = vadd.f32 %v1481, %v1721
    %v1802 = vadd.f32 %v1482, %v1723
    %v1803 = vadd.f32 %v1483, %v1725
    %v1804 = vadd.f32 %v1484, %v1727
    %v1805 = vadd.f32 %v1485, %v1729
    %v1806 = vadd.f32 %v1486, %v1731
    %v1807 = vadd.f32 %v1487, %v1733
    %v1808 = vadd.f32 %v1488, %v1735
    %v1809 = vadd.f32 %v1489, %v1737
    %v1810 = vadd.f32 %v1490, %v1739
    %v1811 = vadd.f32 %v1491, %v1741
    %v1812 = vadd.f32 %v1492, %v1743
    %v1813 = vadd.f32 %v1493, %v1745
    %v1814 = vadd.f32 %v1494, %v1747
    %v1815 = vadd.f32 %v1495, %v1749
    %v1816 = vadd.f32 %v1496, %v1751
    %v1817 = vadd.f32 %v1497, %v1753
    %vm1818 = vcmp.eq.f32.partialorder %v50, 2.0
    %vm1819 = vcmp.eq.f32.partialorder %v51, 2.0
    %vm1820 = vcmp.eq.f32.partialorder %v52, 2.0
    %vm1821 = vcmp.eq.f32.partialorder %v53, 2.0
    %vm1822 = vcmp.eq.f32.partialorder %v54, 2.0
    %vm1823 = vcmp.eq.f32.partialorder %v55, 2.0
    %vm1824 = vcmp.eq.f32.partialorder %v56, 2.0
    %vm1825 = vcmp.eq.f32.partialorder %v57, 2.0
    %vm1826 = vcmp.eq.f32.partialorder %v58, 2.0
    %vm1827 = vcmp.eq.f32.partialorder %v59, 2.0
    %vm1828 = vcmp.eq.f32.partialorder %v60, 2.0
    %vm1829 = vcmp.eq.f32.partialorder %v61, 2.0
    %vm1830 = vcmp.eq.f32.partialorder %v62, 2.0
    %vm1831 = vcmp.eq.f32.partialorder %v63, 2.0
    %vm1832 = vcmp.eq.f32.partialorder %v64, 2.0
    %vm1833 = vcmp.eq.f32.partialorder %v65, 2.0
    %vm1834 = vcmp.eq.f32.partialorder %v66, 2.0
    %vm1835 = vcmp.eq.f32.partialorder %v67, 2.0
    %vm1836 = vcmp.eq.f32.partialorder %v68, 2.0
    %vm1837 = vcmp.eq.f32.partialorder %v69, 2.0
    %vm1838 = vcmp.eq.f32.partialorder %v70, 2.0
    %vm1839 = vcmp.eq.f32.partialorder %v71, 2.0
    %vm1840 = vcmp.eq.f32.partialorder %v72, 2.0
    %vm1841 = vcmp.eq.f32.partialorder %v73, 2.0
    %vm1842 = vcmp.eq.f32.partialorder %v74, 2.0
    %vm1843 = vcmp.eq.f32.partialorder %v75, 2.0
    %vm1844 = vcmp.eq.f32.partialorder %v76, 2.0
    %vm1845 = vcmp.eq.f32.partialorder %v77, 2.0
    %vm1846 = vcmp.eq.f32.partialorder %v78, 2.0
    %vm1847 = vcmp.eq.f32.partialorder %v79, 2.0
    %vm1848 = vcmp.eq.f32.partialorder %v80, 2.0
    %vm1849 = vcmp.eq.f32.partialorder %v81, 2.0
    %v1850 = vsel %vm1818, 1, 0
    %v1851 = vsel %vm1819, 1, 0
    %v1852 = vsel %vm1820, 1, 0
    %v1853 = vsel %vm1821, 1, 0
    %v1854 = vsel %vm1822, 1, 0
    %v1855 = vsel %vm1823, 1, 0
    %v1856 = vsel %vm1824, 1, 0
    %v1857 = vsel %vm1825, 1, 0
    %v1858 = vsel %vm1826, 1, 0
    %v1859 = vsel %vm1827, 1, 0
    %v1860 = vsel %vm1828, 1, 0
    %v1861 = vsel %vm1829, 1, 0
    %v1862 = vsel %vm1830, 1, 0
    %v1863 = vsel %vm1831, 1, 0
    %v1864 = vsel %vm1832, 1, 0
    %v1865 = vsel %vm1833, 1, 0
    %v1866 = vsel %vm1834, 1, 0
    %v1867 = vsel %vm1835, 1, 0
    %v1868 = vsel %vm1836, 1, 0
    %v1869 = vsel %vm1837, 1, 0
    %v1870 = vsel %vm1838, 1, 0
    %v1871 = vsel %vm1839, 1, 0
    %v1872 = vsel %vm1840, 1, 0
    %v1873 = vsel %vm1841, 1, 0
    %v1874 = vsel %vm1842, 1, 0
    %v1875 = vsel %vm1843, 1, 0
    %v1876 = vsel %vm1844, 1, 0
    %v1877 = vsel %vm1845, 1, 0
    %v1878 = vsel %vm1846, 1, 0
    %v1879 = vsel %vm1847, 1, 0
    %v1880 = vsel %vm1848, 1, 0
    %v1881 = vsel %vm1849, 1, 0
    %v1882 = vcvt.s32.f32 %v1850
    %v1883 = vcvt.s32.f32 %v1851
    %v1884 = vcvt.s32.f32 %v1852
    %v1885 = vcvt.s32.f32 %v1853
    %v1886 = vcvt.s32.f32 %v1854
    %v1887 = vcvt.s32.f32 %v1855
    %v1888 = vcvt.s32.f32 %v1856
    %v1889 = vcvt.s32.f32 %v1857
    %v1890 = vcvt.s32.f32 %v1858
    %v1891 = vcvt.s32.f32 %v1859
    %v1892 = vcvt.s32.f32 %v1860
    %v1893 = vcvt.s32.f32 %v1861
    %v1894 = vcvt.s32.f32 %v1862
    %v1895 = vcvt.s32.f32 %v1863
    %v1896 = vcvt.s32.f32 %v1864
    %v1897 = vcvt.s32.f32 %v1865
    %v1898 = vcvt.s32.f32 %v1866
    %v1899 = vcvt.s32.f32 %v1867
    %v1900 = vcvt.s32.f32 %v1868
    %v1901 = vcvt.s32.f32 %v1869
    %v1902 = vcvt.s32.f32 %v1870
    %v1903 = vcvt.s32.f32 %v1871
    %v1904 = vcvt.s32.f32 %v1872
    %v1905 = vcvt.s32.f32 %v1873
    %v1906 = vcvt.s32.f32 %v1874
    %v1907 = vcvt.s32.f32 %v1875
    %v1908 = vcvt.s32.f32 %v1876
    %v1909 = vcvt.s32.f32 %v1877
    %v1910 = vcvt.s32.f32 %v1878
    %v1911 = vcvt.s32.f32 %v1879
    %v1912 = vcvt.s32.f32 %v1880
    %v1913 = vcvt.s32.f32 %v1881
    %1915 = vset.pattern.permute.xlu0 1
    %1916 = vperm.xlu0 %1915, %v1882
    %v1917 = vpop.permute.xlu0 %1916
    %1920 = vset.pattern.permute.xlu0 1
    %1921 = vperm.xlu0 %1920, %v1883
    %v1922 = vpop.permute.xlu0 %1921
    %1925 = vset.pattern.permute.xlu0 1
    %1926 = vperm.xlu0 %1925, %v1884
    %v1927 = vpop.permute.xlu0 %1926
    %1930 = vset.pattern.permute.xlu0 1
    %1931 = vperm.xlu0 %1930, %v1885
    %v1932 = vpop.permute.xlu0 %1931
    %1935 = vset.pattern.permute.xlu0 1
    %1936 = vperm.xlu0 %1935, %v1886
    %v1937 = vpop.permute.xlu0 %1936
    %1940 = vset.pattern.permute.xlu0 1
    %1941 = vperm.xlu0 %1940, %v1887
    %v1942 = vpop.permute.xlu0 %1941
    %1945 = vset.pattern.permute.xlu0 1
    %1946 = vperm.xlu0 %1945, %v1888
    %v1947 = vpop.permute.xlu0 %1946
    %1950 = vset.pattern.permute.xlu0 1
    %1951 = vperm.xlu0 %1950, %v1889
    %v1952 = vpop.permute.xlu0 %1951
    %1955 = vset.pattern.permute.xlu0 1
    %1956 = vperm.xlu0 %1955, %v1890
    %v1957 = vpop.permute.xlu0 %1956
    %1960 = vset.pattern.permute.xlu0 1
    %1961 = vperm.xlu0 %1960, %v1891
    %v1962 = vpop.permute.xlu0 %1961
    %1965 = vset.pattern.permute.xlu0 1
    %1966 = vperm.xlu0 %1965, %v1892
    %v1967 = vpop.permute.xlu0 %1966
    %1970 = vset.pattern.permute.xlu0 1
    %1971 = vperm.xlu0 %1970, %v1893
    %v1972 = vpop.permute.xlu0 %1971
    %1975 = vset.pattern.permute.xlu0 1
    %1976 = vperm.xlu0 %1975, %v1894
    %v1977 = vpop.permute.xlu0 %1976
    %1980 = vset.pattern.permute.xlu0 1
    %1981 = vperm.xlu0 %1980, %v1895
    %v1982 = vpop.permute.xlu0 %1981
    %1985 = vset.pattern.permute.xlu0 1
    %1986 = vperm.xlu0 %1985, %v1896
    %v1987 = vpop.permute.xlu0 %1986
    %1990 = vset.pattern.permute.xlu0 1
    %1991 = vperm.xlu0 %1990, %v1897
    %v1992 = vpop.permute.xlu0 %1991
    %1995 = vset.pattern.permute.xlu0 1
    %1996 = vperm.xlu0 %1995, %v1898
    %v1997 = vpop.permute.xlu0 %1996
    %2000 = vset.pattern.permute.xlu0 1
    %2001 = vperm.xlu0 %2000, %v1899
    %v2002 = vpop.permute.xlu0 %2001
    %2005 = vset.pattern.permute.xlu0 1
    %2006 = vperm.xlu0 %2005, %v1900
    %v2007 = vpop.permute.xlu0 %2006
    %2010 = vset.pattern.permute.xlu0 1
    %2011 = vperm.xlu0 %2010, %v1901
    %v2012 = vpop.permute.xlu0 %2011
    %2015 = vset.pattern.permute.xlu0 1
    %2016 = vperm.xlu0 %2015, %v1902
    %v2017 = vpop.permute.xlu0 %2016
    %2020 = vset.pattern.permute.xlu0 1
    %2021 = vperm.xlu0 %2020, %v1903
    %v2022 = vpop.permute.xlu0 %2021
    %2025 = vset.pattern.permute.xlu0 1
    %2026 = vperm.xlu0 %2025, %v1904
    %v2027 = vpop.permute.xlu0 %2026
    %2030 = vset.pattern.permute.xlu0 1
    %2031 = vperm.xlu0 %2030, %v1905
    %v2032 = vpop.permute.xlu0 %2031
    %2035 = vset.pattern.permute.xlu0 1
    %2036 = vperm.xlu0 %2035, %v1906
    %v2037 = vpop.permute.xlu0 %2036
    %2040 = vset.pattern.permute.xlu0 1
    %2041 = vperm.xlu0 %2040, %v1907
    %v2042 = vpop.permute.xlu0 %2041
    %2045 = vset.pattern.permute.xlu0 1
    %2046 = vperm.xlu0 %2045, %v1908
    %v2047 = vpop.permute.xlu0 %2046
    %2050 = vset.pattern.permute.xlu0 1
    %2051 = vperm.xlu0 %2050, %v1909
    %v2052 = vpop.permute.xlu0 %2051
    %2055 = vset.pattern.permute.xlu0 1
    %2056 = vperm.xlu0 %2055, %v1910
    %v2057 = vpop.permute.xlu0 %2056
    %2060 = vset.pattern.permute.xlu0 1
    %2061 = vperm.xlu0 %2060, %v1911
    %v2062 = vpop.permute.xlu0 %2061
    %2065 = vset.pattern.permute.xlu0 1
    %2066 = vperm.xlu0 %2065, %v1912
    %v2067 = vpop.permute.xlu0 %2066
    %2070 = vset.pattern.permute.xlu0 1
    %2071 = vperm.xlu0 %2070, %v1913
    %v2072 = vpop.permute.xlu0 %2071
    %v2074 = vmul.f32 %v1917, %v570
    %v2075 = vmul.f32 %v1922, %v571
    %v2076 = vmul.f32 %v1927, %v572
    %v2077 = vmul.f32 %v1932, %v573
    %v2078 = vmul.f32 %v1937, %v574
    %v2079 = vmul.f32 %v1942, %v575
    %v2080 = vmul.f32 %v1947, %v576
    %v2081 = vmul.f32 %v1952, %v577
    %v2082 = vmul.f32 %v1957, %v578
    %v2083 = vmul.f32 %v1962, %v579
    %v2084 = vmul.f32 %v1967, %v580
    %v2085 = vmul.f32 %v1972, %v581
    %v2086 = vmul.f32 %v1977, %v582
    %v2087 = vmul.f32 %v1982, %v583
    %v2088 = vmul.f32 %v1987, %v584
    %v2089 = vmul.f32 %v1992, %v585
    %v2090 = vmul.f32 %v1997, %v586
    %v2091 = vmul.f32 %v2002, %v587
    %v2092 = vmul.f32 %v2007, %v588
    %v2093 = vmul.f32 %v2012, %v589
    %v2094 = vmul.f32 %v2017, %v590
    %v2095 = vmul.f32 %v2022, %v591
    %v2096 = vmul.f32 %v2027, %v592
    %v2097 = vmul.f32 %v2032, %v593
    %v2098 = vmul.f32 %v2037, %v594
    %v2099 = vmul.f32 %v2042, %v595
    %v2100 = vmul.f32 %v2047, %v596
    %v2101 = vmul.f32 %v2052, %v597
    %v2102 = vmul.f32 %v2057, %v598
    %v2103 = vmul.f32 %v2062, %v599
    %v2104 = vmul.f32 %v2067, %v600
    %v2105 = vmul.f32 %v2072, %v601
    %2106 = vset.pattern.permute.xlu0 4
    %2107 = vperm.xlu0 %2106, %v50
    %v2108 = vpop.permute.xlu0 %2107
    %2110 = vset.pattern.permute.xlu0 4
    %2111 = vperm.xlu0 %2110, %v51
    %v2112 = vpop.permute.xlu0 %2111
    %2114 = vset.pattern.permute.xlu0 4
    %2115 = vperm.xlu0 %2114, %v52
    %v2116 = vpop.permute.xlu0 %2115
    %2118 = vset.pattern.permute.xlu0 4
    %2119 = vperm.xlu0 %2118, %v53
    %v2120 = vpop.permute.xlu0 %2119
    %2122 = vset.pattern.permute.xlu0 4
    %2123 = vperm.xlu0 %2122, %v54
    %v2124 = vpop.permute.xlu0 %2123
    %2126 = vset.pattern.permute.xlu0 4
    %2127 = vperm.xlu0 %2126, %v55
    %v2128 = vpop.permute.xlu0 %2127
    %2130 = vset.pattern.permute.xlu0 4
    %2131 = vperm.xlu0 %2130, %v56
    %v2132 = vpop.permute.xlu0 %2131
    %2134 = vset.pattern.permute.xlu0 4
    %2135 = vperm.xlu0 %2134, %v57
    %v2136 = vpop.permute.xlu0 %2135
    %2138 = vset.pattern.permute.xlu0 4
    %2139 = vperm.xlu0 %2138, %v58
    %v2140 = vpop.permute.xlu0 %2139
    %2142 = vset.pattern.permute.xlu0 4
    %2143 = vperm.xlu0 %2142, %v59
    %v2144 = vpop.permute.xlu0 %2143
    %2146 = vset.pattern.permute.xlu0 4
    %2147 = vperm.xlu0 %2146, %v60
    %v2148 = vpop.permute.xlu0 %2147
    %2150 = vset.pattern.permute.xlu0 4
    %2151 = vperm.xlu0 %2150, %v61
    %v2152 = vpop.permute.xlu0 %2151
    %2154 = vset.pattern.permute.xlu0 4
    %2155 = vperm.xlu0 %2154, %v62
    %v2156 = vpop.permute.xlu0 %2155
    %2158 = vset.pattern.permute.xlu0 4
    %2159 = vperm.xlu0 %2158, %v63
    %v2160 = vpop.permute.xlu0 %2159
    %2162 = vset.pattern.permute.xlu0 4
    %2163 = vperm.xlu0 %2162, %v64
    %v2164 = vpop.permute.xlu0 %2163
    %2166 = vset.pattern.permute.xlu0 4
    %2167 = vperm.xlu0 %2166, %v65
    %v2168 = vpop.permute.xlu0 %2167
    %2170 = vset.pattern.permute.xlu0 4
    %2171 = vperm.xlu0 %2170, %v66
    %v2172 = vpop.permute.xlu0 %2171
    %2174 = vset.pattern.permute.xlu0 4
    %2175 = vperm.xlu0 %2174, %v67
    %v2176 = vpop.permute.xlu0 %2175
    %2178 = vset.pattern.permute.xlu0 4
    %2179 = vperm.xlu0 %2178, %v68
    %v2180 = vpop.permute.xlu0 %2179
    %2182 = vset.pattern.permute.xlu0 4
    %2183 = vperm.xlu0 %2182, %v69
    %v2184 = vpop.permute.xlu0 %2183
    %2186 = vset.pattern.permute.xlu0 4
    %2187 = vperm.xlu0 %2186, %v70
    %v2188 = vpop.permute.xlu0 %2187
    %2190 = vset.pattern.permute.xlu0 4
    %2191 = vperm.xlu0 %2190, %v71
    %v2192 = vpop.permute.xlu0 %2191
    %2194 = vset.pattern.permute.xlu0 4
    %2195 = vperm.xlu0 %2194, %v72
    %v2196 = vpop.permute.xlu0 %2195
    %2198 = vset.pattern.permute.xlu0 4
    %2199 = vperm.xlu0 %2198, %v73
    %v2200 = vpop.permute.xlu0 %2199
    %2202 = vset.pattern.permute.xlu0 4
    %2203 = vperm.xlu0 %2202, %v74
    %v2204 = vpop.permute.xlu0 %2203
    %2206 = vset.pattern.permute.xlu0 4
    %2207 = vperm.xlu0 %2206, %v75
    %v2208 = vpop.permute.xlu0 %2207
    %2210 = vset.pattern.permute.xlu0 4
    %2211 = vperm.xlu0 %2210, %v76
    %v2212 = vpop.permute.xlu0 %2211
    %2214 = vset.pattern.permute.xlu0 4
    %2215 = vperm.xlu0 %2214, %v77
    %v2216 = vpop.permute.xlu0 %2215
    %2218 = vset.pattern.permute.xlu0 4
    %2219 = vperm.xlu0 %2218, %v78
    %v2220 = vpop.permute.xlu0 %2219
    %2222 = vset.pattern.permute.xlu0 4
    %2223 = vperm.xlu0 %2222, %v79
    %v2224 = vpop.permute.xlu0 %2223
    %2226 = vset.pattern.permute.xlu0 4
    %2227 = vperm.xlu0 %2226, %v80
    %v2228 = vpop.permute.xlu0 %2227
    %2230 = vset.pattern.permute.xlu0 4
    %2231 = vperm.xlu0 %2230, %v81
    %v2232 = vpop.permute.xlu0 %2231
    %v2234 = vmul.f32 %v2108, %v570
    %v2235 = vmul.f32 %v2112, %v571
    %v2236 = vmul.f32 %v2116, %v572
    %v2237 = vmul.f32 %v2120, %v573
    %v2238 = vmul.f32 %v2124, %v574
    %v2239 = vmul.f32 %v2128, %v575
    %v2240 = vmul.f32 %v2132, %v576
    %v2241 = vmul.f32 %v2136, %v577
    %v2242 = vmul.f32 %v2140, %v578
    %v2243 = vmul.f32 %v2144, %v579
    %v2244 = vmul.f32 %v2148, %v580
    %v2245 = vmul.f32 %v2152, %v581
    %v2246 = vmul.f32 %v2156, %v582
    %v2247 = vmul.f32 %v2160, %v583
    %v2248 = vmul.f32 %v2164, %v584
    %v2249 = vmul.f32 %v2168, %v585
    %v2250 = vmul.f32 %v2172, %v586
    %v2251 = vmul.f32 %v2176, %v587
    %v2252 = vmul.f32 %v2180, %v588
    %v2253 = vmul.f32 %v2184, %v589
    %v2254 = vmul.f32 %v2188, %v590
    %v2255 = vmul.f32 %v2192, %v591
    %v2256 = vmul.f32 %v2196, %v592
    %v2257 = vmul.f32 %v2200, %v593
    %v2258 = vmul.f32 %v2204, %v594
    %v2259 = vmul.f32 %v2208, %v595
    %v2260 = vmul.f32 %v2212, %v596
    %v2261 = vmul.f32 %v2216, %v597
    %v2262 = vmul.f32 %v2220, %v598
    %v2263 = vmul.f32 %v2224, %v599
    %v2264 = vmul.f32 %v2228, %v600
    %v2265 = vmul.f32 %v2232, %v601
    %2298 = vrot.lane.b32.xlu0 %v2234, 96
    %v2299 = vpop.permute.xlu0 %2298
    %2300 = vrot.lane.b32.xlu0 %v2235, 96
    %v2301 = vpop.permute.xlu0 %2300
    %2302 = vrot.lane.b32.xlu0 %v2236, 96
    %v2303 = vpop.permute.xlu0 %2302
    %2304 = vrot.lane.b32.xlu0 %v2237, 96
    %v2305 = vpop.permute.xlu0 %2304
    %2306 = vrot.lane.b32.xlu0 %v2238, 96
    %v2307 = vpop.permute.xlu0 %2306
    %2308 = vrot.lane.b32.xlu0 %v2239, 96
    %v2309 = vpop.permute.xlu0 %2308
    %2310 = vrot.lane.b32.xlu0 %v2240, 96
    %v2311 = vpop.permute.xlu0 %2310
    %2312 = vrot.lane.b32.xlu0 %v2241, 96
    %v2313 = vpop.permute.xlu0 %2312
    %2314 = vrot.lane.b32.xlu0 %v2242, 96
    %v2315 = vpop.permute.xlu0 %2314
    %2316 = vrot.lane.b32.xlu0 %v2243, 96
    %v2317 = vpop.permute.xlu0 %2316
    %2318 = vrot.lane.b32.xlu0 %v2244, 96
    %v2319 = vpop.permute.xlu0 %2318
    %2320 = vrot.lane.b32.xlu0 %v2245, 96
    %v2321 = vpop.permute.xlu0 %2320
    %2322 = vrot.lane.b32.xlu0 %v2246, 96
    %v2323 = vpop.permute.xlu0 %2322
    %2324 = vrot.lane.b32.xlu0 %v2247, 96
    %v2325 = vpop.permute.xlu0 %2324
    %2326 = vrot.lane.b32.xlu0 %v2248, 96
    %v2327 = vpop.permute.xlu0 %2326
    %2328 = vrot.lane.b32.xlu0 %v2249, 96
    %v2329 = vpop.permute.xlu0 %2328
    %2330 = vrot.lane.b32.xlu0 %v2250, 96
    %v2331 = vpop.permute.xlu0 %2330
    %2332 = vrot.lane.b32.xlu0 %v2251, 96
    %v2333 = vpop.permute.xlu0 %2332
    %2334 = vrot.lane.b32.xlu0 %v2252, 96
    %v2335 = vpop.permute.xlu0 %2334
    %2336 = vrot.lane.b32.xlu0 %v2253, 96
    %v2337 = vpop.permute.xlu0 %2336
    %2338 = vrot.lane.b32.xlu0 %v2254, 96
    %v2339 = vpop.permute.xlu0 %2338
    %2340 = vrot.lane.b32.xlu0 %v2255, 96
    %v2341 = vpop.permute.xlu0 %2340
    %2342 = vrot.lane.b32.xlu0 %v2256, 96
    %v2343 = vpop.permute.xlu0 %2342
    %2344 = vrot.lane.b32.xlu0 %v2257, 96
    %v2345 = vpop.permute.xlu0 %2344
    %2346 = vrot.lane.b32.xlu0 %v2258, 96
    %v2347 = vpop.permute.xlu0 %2346
    %2348 = vrot.lane.b32.xlu0 %v2259, 96
    %v2349 = vpop.permute.xlu0 %2348
    %2350 = vrot.lane.b32.xlu0 %v2260, 96
    %v2351 = vpop.permute.xlu0 %2350
    %2352 = vrot.lane.b32.xlu0 %v2261, 96
    %v2353 = vpop.permute.xlu0 %2352
    %2354 = vrot.lane.b32.xlu0 %v2262, 96
    %v2355 = vpop.permute.xlu0 %2354
    %2356 = vrot.lane.b32.xlu0 %v2263, 96
    %v2357 = vpop.permute.xlu0 %2356
    %2358 = vrot.lane.b32.xlu0 %v2264, 96
    %v2359 = vpop.permute.xlu0 %2358
    %2360 = vrot.lane.b32.xlu0 %v2265, 96
    %v2361 = vpop.permute.xlu0 %2360
    %v2394 = vadd.f32 %v2074, %v2299
    %v2395 = vadd.f32 %v2075, %v2301
    %v2396 = vadd.f32 %v2076, %v2303
    %v2397 = vadd.f32 %v2077, %v2305
    %v2398 = vadd.f32 %v2078, %v2307
    %v2399 = vadd.f32 %v2079, %v2309
    %v2400 = vadd.f32 %v2080, %v2311
    %v2401 = vadd.f32 %v2081, %v2313
    %v2402 = vadd.f32 %v2082, %v2315
    %v2403 = vadd.f32 %v2083, %v2317
    %v2404 = vadd.f32 %v2084, %v2319
    %v2405 = vadd.f32 %v2085, %v2321
    %v2406 = vadd.f32 %v2086, %v2323
    %v2407 = vadd.f32 %v2087, %v2325
    %v2408 = vadd.f32 %v2088, %v2327
    %v2409 = vadd.f32 %v2089, %v2329
    %v2410 = vadd.f32 %v2090, %v2331
    %v2411 = vadd.f32 %v2091, %v2333
    %v2412 = vadd.f32 %v2092, %v2335
    %v2413 = vadd.f32 %v2093, %v2337
    %v2414 = vadd.f32 %v2094, %v2339
    %v2415 = vadd.f32 %v2095, %v2341
    %v2416 = vadd.f32 %v2096, %v2343
    %v2417 = vadd.f32 %v2097, %v2345
    %v2418 = vadd.f32 %v2098, %v2347
    %v2419 = vadd.f32 %v2099, %v2349
    %v2420 = vadd.f32 %v2100, %v2351
    %v2421 = vadd.f32 %v2101, %v2353
    %v2422 = vadd.f32 %v2102, %v2355
    %v2423 = vadd.f32 %v2103, %v2357
    %v2424 = vadd.f32 %v2104, %v2359
    %v2425 = vadd.f32 %v2105, %v2361
    %vm2426 = vcmp.eq.f32.partialorder %v50, 3.0
    %vm2427 = vcmp.eq.f32.partialorder %v51, 3.0
    %vm2428 = vcmp.eq.f32.partialorder %v52, 3.0
    %vm2429 = vcmp.eq.f32.partialorder %v53, 3.0
    %vm2430 = vcmp.eq.f32.partialorder %v54, 3.0
    %vm2431 = vcmp.eq.f32.partialorder %v55, 3.0
    %vm2432 = vcmp.eq.f32.partialorder %v56, 3.0
    %vm2433 = vcmp.eq.f32.partialorder %v57, 3.0
    %vm2434 = vcmp.eq.f32.partialorder %v58, 3.0
    %vm2435 = vcmp.eq.f32.partialorder %v59, 3.0
    %vm2436 = vcmp.eq.f32.partialorder %v60, 3.0
    %vm2437 = vcmp.eq.f32.partialorder %v61, 3.0
    %vm2438 = vcmp.eq.f32.partialorder %v62, 3.0
    %vm2439 = vcmp.eq.f32.partialorder %v63, 3.0
    %vm2440 = vcmp.eq.f32.partialorder %v64, 3.0
    %vm2441 = vcmp.eq.f32.partialorder %v65, 3.0
    %vm2442 = vcmp.eq.f32.partialorder %v66, 3.0
    %vm2443 = vcmp.eq.f32.partialorder %v67, 3.0
    %vm2444 = vcmp.eq.f32.partialorder %v68, 3.0
    %vm2445 = vcmp.eq.f32.partialorder %v69, 3.0
    %vm2446 = vcmp.eq.f32.partialorder %v70, 3.0
    %vm2447 = vcmp.eq.f32.partialorder %v71, 3.0
    %vm2448 = vcmp.eq.f32.partialorder %v72, 3.0
    %vm2449 = vcmp.eq.f32.partialorder %v73, 3.0
    %vm2450 = vcmp.eq.f32.partialorder %v74, 3.0
    %vm2451 = vcmp.eq.f32.partialorder %v75, 3.0
    %vm2452 = vcmp.eq.f32.partialorder %v76, 3.0
    %vm2453 = vcmp.eq.f32.partialorder %v77, 3.0
    %vm2454 = vcmp.eq.f32.partialorder %v78, 3.0
    %vm2455 = vcmp.eq.f32.partialorder %v79, 3.0
    %vm2456 = vcmp.eq.f32.partialorder %v80, 3.0
    %vm2457 = vcmp.eq.f32.partialorder %v81, 3.0
    %v2458 = vsel %vm2426, 1, 0
    %v2459 = vsel %vm2427, 1, 0
    %v2460 = vsel %vm2428, 1, 0
    %v2461 = vsel %vm2429, 1, 0
    %v2462 = vsel %vm2430, 1, 0
    %v2463 = vsel %vm2431, 1, 0
    %v2464 = vsel %vm2432, 1, 0
    %v2465 = vsel %vm2433, 1, 0
    %v2466 = vsel %vm2434, 1, 0
    %v2467 = vsel %vm2435, 1, 0
    %v2468 = vsel %vm2436, 1, 0
    %v2469 = vsel %vm2437, 1, 0
    %v2470 = vsel %vm2438, 1, 0
    %v2471 = vsel %vm2439, 1, 0
    %v2472 = vsel %vm2440, 1, 0
    %v2473 = vsel %vm2441, 1, 0
    %v2474 = vsel %vm2442, 1, 0
    %v2475 = vsel %vm2443, 1, 0
    %v2476 = vsel %vm2444, 1, 0
    %v2477 = vsel %vm2445, 1, 0
    %v2478 = vsel %vm2446, 1, 0
    %v2479 = vsel %vm2447, 1, 0
    %v2480 = vsel %vm2448, 1, 0
    %v2481 = vsel %vm2449, 1, 0
    %v2482 = vsel %vm2450, 1, 0
    %v2483 = vsel %vm2451, 1, 0
    %v2484 = vsel %vm2452, 1, 0
    %v2485 = vsel %vm2453, 1, 0
    %v2486 = vsel %vm2454, 1, 0
    %v2487 = vsel %vm2455, 1, 0
    %v2488 = vsel %vm2456, 1, 0
    %v2489 = vsel %vm2457, 1, 0
    %v2490 = vcvt.s32.f32 %v2458
    %v2491 = vcvt.s32.f32 %v2459
    %v2492 = vcvt.s32.f32 %v2460
    %v2493 = vcvt.s32.f32 %v2461
    %v2494 = vcvt.s32.f32 %v2462
    %v2495 = vcvt.s32.f32 %v2463
    %v2496 = vcvt.s32.f32 %v2464
    %v2497 = vcvt.s32.f32 %v2465
    %v2498 = vcvt.s32.f32 %v2466
    %v2499 = vcvt.s32.f32 %v2467
    %v2500 = vcvt.s32.f32 %v2468
    %v2501 = vcvt.s32.f32 %v2469
    %v2502 = vcvt.s32.f32 %v2470
    %v2503 = vcvt.s32.f32 %v2471
    %v2504 = vcvt.s32.f32 %v2472
    %v2505 = vcvt.s32.f32 %v2473
    %v2506 = vcvt.s32.f32 %v2474
    %v2507 = vcvt.s32.f32 %v2475
    %v2508 = vcvt.s32.f32 %v2476
    %v2509 = vcvt.s32.f32 %v2477
    %v2510 = vcvt.s32.f32 %v2478
    %v2511 = vcvt.s32.f32 %v2479
    %v2512 = vcvt.s32.f32 %v2480
    %v2513 = vcvt.s32.f32 %v2481
    %v2514 = vcvt.s32.f32 %v2482
    %v2515 = vcvt.s32.f32 %v2483
    %v2516 = vcvt.s32.f32 %v2484
    %v2517 = vcvt.s32.f32 %v2485
    %v2518 = vcvt.s32.f32 %v2486
    %v2519 = vcvt.s32.f32 %v2487
    %v2520 = vcvt.s32.f32 %v2488
    %v2521 = vcvt.s32.f32 %v2489
    %2523 = vset.pattern.permute.xlu0 1
    %2524 = vperm.xlu0 %2523, %v2490
    %v2525 = vpop.permute.xlu0 %2524
    %2528 = vset.pattern.permute.xlu0 1
    %2529 = vperm.xlu0 %2528, %v2491
    %v2530 = vpop.permute.xlu0 %2529
    %2533 = vset.pattern.permute.xlu0 1
    %2534 = vperm.xlu0 %2533, %v2492
    %v2535 = vpop.permute.xlu0 %2534
    %2538 = vset.pattern.permute.xlu0 1
    %2539 = vperm.xlu0 %2538, %v2493
    %v2540 = vpop.permute.xlu0 %2539
    %2543 = vset.pattern.permute.xlu0 1
    %2544 = vperm.xlu0 %2543, %v2494
    %v2545 = vpop.permute.xlu0 %2544
    %2548 = vset.pattern.permute.xlu0 1
    %2549 = vperm.xlu0 %2548, %v2495
    %v2550 = vpop.permute.xlu0 %2549
    %2553 = vset.pattern.permute.xlu0 1
    %2554 = vperm.xlu0 %2553, %v2496
    %v2555 = vpop.permute.xlu0 %2554
    %2558 = vset.pattern.permute.xlu0 1
    %2559 = vperm.xlu0 %2558, %v2497
    %v2560 = vpop.permute.xlu0 %2559
    %2563 = vset.pattern.permute.xlu0 1
    %2564 = vperm.xlu0 %2563, %v2498
    %v2565 = vpop.permute.xlu0 %2564
    %2568 = vset.pattern.permute.xlu0 1
    %2569 = vperm.xlu0 %2568, %v2499
    %v2570 = vpop.permute.xlu0 %2569
    %2573 = vset.pattern.permute.xlu0 1
    %2574 = vperm.xlu0 %2573, %v2500
    %v2575 = vpop.permute.xlu0 %2574
    %2578 = vset.pattern.permute.xlu0 1
    %2579 = vperm.xlu0 %2578, %v2501
    %v2580 = vpop.permute.xlu0 %2579
    %2583 = vset.pattern.permute.xlu0 1
    %2584 = vperm.xlu0 %2583, %v2502
    %v2585 = vpop.permute.xlu0 %2584
    %2588 = vset.pattern.permute.xlu0 1
    %2589 = vperm.xlu0 %2588, %v2503
    %v2590 = vpop.permute.xlu0 %2589
    %2593 = vset.pattern.permute.xlu0 1
    %2594 = vperm.xlu0 %2593, %v2504
    %v2595 = vpop.permute.xlu0 %2594
    %2598 = vset.pattern.permute.xlu0 1
    %2599 = vperm.xlu0 %2598, %v2505
    %v2600 = vpop.permute.xlu0 %2599
    %2603 = vset.pattern.permute.xlu0 1
    %2604 = vperm.xlu0 %2603, %v2506
    %v2605 = vpop.permute.xlu0 %2604
    %2608 = vset.pattern.permute.xlu0 1
    %2609 = vperm.xlu0 %2608, %v2507
    %v2610 = vpop.permute.xlu0 %2609
    %2613 = vset.pattern.permute.xlu0 1
    %2614 = vperm.xlu0 %2613, %v2508
    %v2615 = vpop.permute.xlu0 %2614
    %2618 = vset.pattern.permute.xlu0 1
    %2619 = vperm.xlu0 %2618, %v2509
    %v2620 = vpop.permute.xlu0 %2619
    %2623 = vset.pattern.permute.xlu0 1
    %2624 = vperm.xlu0 %2623, %v2510
    %v2625 = vpop.permute.xlu0 %2624
    %2628 = vset.pattern.permute.xlu0 1
    %2629 = vperm.xlu0 %2628, %v2511
    %v2630 = vpop.permute.xlu0 %2629
    %2633 = vset.pattern.permute.xlu0 1
    %2634 = vperm.xlu0 %2633, %v2512
    %v2635 = vpop.permute.xlu0 %2634
    %2638 = vset.pattern.permute.xlu0 1
    %2639 = vperm.xlu0 %2638, %v2513
    %v2640 = vpop.permute.xlu0 %2639
    %2643 = vset.pattern.permute.xlu0 1
    %2644 = vperm.xlu0 %2643, %v2514
    %v2645 = vpop.permute.xlu0 %2644
    %2648 = vset.pattern.permute.xlu0 1
    %2649 = vperm.xlu0 %2648, %v2515
    %v2650 = vpop.permute.xlu0 %2649
    %2653 = vset.pattern.permute.xlu0 1
    %2654 = vperm.xlu0 %2653, %v2516
    %v2655 = vpop.permute.xlu0 %2654
    %2658 = vset.pattern.permute.xlu0 1
    %2659 = vperm.xlu0 %2658, %v2517
    %v2660 = vpop.permute.xlu0 %2659
    %2663 = vset.pattern.permute.xlu0 1
    %2664 = vperm.xlu0 %2663, %v2518
    %v2665 = vpop.permute.xlu0 %2664
    %2668 = vset.pattern.permute.xlu0 1
    %2669 = vperm.xlu0 %2668, %v2519
    %v2670 = vpop.permute.xlu0 %2669
    %2673 = vset.pattern.permute.xlu0 1
    %2674 = vperm.xlu0 %2673, %v2520
    %v2675 = vpop.permute.xlu0 %2674
    %2678 = vset.pattern.permute.xlu0 1
    %2679 = vperm.xlu0 %2678, %v2521
    %v2680 = vpop.permute.xlu0 %2679
    %v2682 = vmul.f32 %v2525, %v570
    %v2683 = vmul.f32 %v2530, %v571
    %v2684 = vmul.f32 %v2535, %v572
    %v2685 = vmul.f32 %v2540, %v573
    %v2686 = vmul.f32 %v2545, %v574
    %v2687 = vmul.f32 %v2550, %v575
    %v2688 = vmul.f32 %v2555, %v576
    %v2689 = vmul.f32 %v2560, %v577
    %v2690 = vmul.f32 %v2565, %v578
    %v2691 = vmul.f32 %v2570, %v579
    %v2692 = vmul.f32 %v2575, %v580
    %v2693 = vmul.f32 %v2580, %v581
    %v2694 = vmul.f32 %v2585, %v582
    %v2695 = vmul.f32 %v2590, %v583
    %v2696 = vmul.f32 %v2595, %v584
    %v2697 = vmul.f32 %v2600, %v585
    %v2698 = vmul.f32 %v2605, %v586
    %v2699 = vmul.f32 %v2610, %v587
    %v2700 = vmul.f32 %v2615, %v588
    %v2701 = vmul.f32 %v2620, %v589
    %v2702 = vmul.f32 %v2625, %v590
    %v2703 = vmul.f32 %v2630, %v591
    %v2704 = vmul.f32 %v2635, %v592
    %v2705 = vmul.f32 %v2640, %v593
    %v2706 = vmul.f32 %v2645, %v594
    %v2707 = vmul.f32 %v2650, %v595
    %v2708 = vmul.f32 %v2655, %v596
    %v2709 = vmul.f32 %v2660, %v597
    %v2710 = vmul.f32 %v2665, %v598
    %v2711 = vmul.f32 %v2670, %v599
    %v2712 = vmul.f32 %v2675, %v600
    %v2713 = vmul.f32 %v2680, %v601
    %2714 = vset.pattern.permute.xlu0 5
    %2715 = vperm.xlu0 %2714, %v50
    %v2716 = vpop.permute.xlu0 %2715
    %2718 = vset.pattern.permute.xlu0 5
    %2719 = vperm.xlu0 %2718, %v51
    %v2720 = vpop.permute.xlu0 %2719
    %2722 = vset.pattern.permute.xlu0 5
    %2723 = vperm.xlu0 %2722, %v52
    %v2724 = vpop.permute.xlu0 %2723
    %2726 = vset.pattern.permute.xlu0 5
    %2727 = vperm.xlu0 %2726, %v53
    %v2728 = vpop.permute.xlu0 %2727
    %2730 = vset.pattern.permute.xlu0 5
    %2731 = vperm.xlu0 %2730, %v54
    %v2732 = vpop.permute.xlu0 %2731
    %2734 = vset.pattern.permute.xlu0 5
    %2735 = vperm.xlu0 %2734, %v55
    %v2736 = vpop.permute.xlu0 %2735
    %2738 = vset.pattern.permute.xlu0 5
    %2739 = vperm.xlu0 %2738, %v56
    %v2740 = vpop.permute.xlu0 %2739
    %2742 = vset.pattern.permute.xlu0 5
    %2743 = vperm.xlu0 %2742, %v57
    %v2744 = vpop.permute.xlu0 %2743
    %2746 = vset.pattern.permute.xlu0 5
    %2747 = vperm.xlu0 %2746, %v58
    %v2748 = vpop.permute.xlu0 %2747
    %2750 = vset.pattern.permute.xlu0 5
    %2751 = vperm.xlu0 %2750, %v59
    %v2752 = vpop.permute.xlu0 %2751
    %2754 = vset.pattern.permute.xlu0 5
    %2755 = vperm.xlu0 %2754, %v60
    %v2756 = vpop.permute.xlu0 %2755
    %2758 = vset.pattern.permute.xlu0 5
    %2759 = vperm.xlu0 %2758, %v61
    %v2760 = vpop.permute.xlu0 %2759
    %2762 = vset.pattern.permute.xlu0 5
    %2763 = vperm.xlu0 %2762, %v62
    %v2764 = vpop.permute.xlu0 %2763
    %2766 = vset.pattern.permute.xlu0 5
    %2767 = vperm.xlu0 %2766, %v63
    %v2768 = vpop.permute.xlu0 %2767
    %2770 = vset.pattern.permute.xlu0 5
    %2771 = vperm.xlu0 %2770, %v64
    %v2772 = vpop.permute.xlu0 %2771
    %2774 = vset.pattern.permute.xlu0 5
    %2775 = vperm.xlu0 %2774, %v65
    %v2776 = vpop.permute.xlu0 %2775
    %2778 = vset.pattern.permute.xlu0 5
    %2779 = vperm.xlu0 %2778, %v66
    %v2780 = vpop.permute.xlu0 %2779
    %2782 = vset.pattern.permute.xlu0 5
    %2783 = vperm.xlu0 %2782, %v67
    %v2784 = vpop.permute.xlu0 %2783
    %2786 = vset.pattern.permute.xlu0 5
    %2787 = vperm.xlu0 %2786, %v68
    %v2788 = vpop.permute.xlu0 %2787
    %2790 = vset.pattern.permute.xlu0 5
    %2791 = vperm.xlu0 %2790, %v69
    %v2792 = vpop.permute.xlu0 %2791
    %2794 = vset.pattern.permute.xlu0 5
    %2795 = vperm.xlu0 %2794, %v70
    %v2796 = vpop.permute.xlu0 %2795
    %2798 = vset.pattern.permute.xlu0 5
    %2799 = vperm.xlu0 %2798, %v71
    %v2800 = vpop.permute.xlu0 %2799
    %2802 = vset.pattern.permute.xlu0 5
    %2803 = vperm.xlu0 %2802, %v72
    %v2804 = vpop.permute.xlu0 %2803
    %2806 = vset.pattern.permute.xlu0 5
    %2807 = vperm.xlu0 %2806, %v73
    %v2808 = vpop.permute.xlu0 %2807
    %2810 = vset.pattern.permute.xlu0 5
    %2811 = vperm.xlu0 %2810, %v74
    %v2812 = vpop.permute.xlu0 %2811
    %2814 = vset.pattern.permute.xlu0 5
    %2815 = vperm.xlu0 %2814, %v75
    %v2816 = vpop.permute.xlu0 %2815
    %2818 = vset.pattern.permute.xlu0 5
    %2819 = vperm.xlu0 %2818, %v76
    %v2820 = vpop.permute.xlu0 %2819
    %2822 = vset.pattern.permute.xlu0 5
    %2823 = vperm.xlu0 %2822, %v77
    %v2824 = vpop.permute.xlu0 %2823
    %2826 = vset.pattern.permute.xlu0 5
    %2827 = vperm.xlu0 %2826, %v78
    %v2828 = vpop.permute.xlu0 %2827
    %2830 = vset.pattern.permute.xlu0 5
    %2831 = vperm.xlu0 %2830, %v79
    %v2832 = vpop.permute.xlu0 %2831
    %2834 = vset.pattern.permute.xlu0 5
    %2835 = vperm.xlu0 %2834, %v80
    %v2836 = vpop.permute.xlu0 %2835
    %2838 = vset.pattern.permute.xlu0 5
    %2839 = vperm.xlu0 %2838, %v81
    %v2840 = vpop.permute.xlu0 %2839
    %v2842 = vmul.f32 %v2716, %v570
    %v2843 = vmul.f32 %v2720, %v571
    %v2844 = vmul.f32 %v2724, %v572
    %v2845 = vmul.f32 %v2728, %v573
    %v2846 = vmul.f32 %v2732, %v574
    %v2847 = vmul.f32 %v2736, %v575
    %v2848 = vmul.f32 %v2740, %v576
    %v2849 = vmul.f32 %v2744, %v577
    %v2850 = vmul.f32 %v2748, %v578
    %v2851 = vmul.f32 %v2752, %v579
    %v2852 = vmul.f32 %v2756, %v580
    %v2853 = vmul.f32 %v2760, %v581
    %v2854 = vmul.f32 %v2764, %v582
    %v2855 = vmul.f32 %v2768, %v583
    %v2856 = vmul.f32 %v2772, %v584
    %v2857 = vmul.f32 %v2776, %v585
    %v2858 = vmul.f32 %v2780, %v586
    %v2859 = vmul.f32 %v2784, %v587
    %v2860 = vmul.f32 %v2788, %v588
    %v2861 = vmul.f32 %v2792, %v589
    %v2862 = vmul.f32 %v2796, %v590
    %v2863 = vmul.f32 %v2800, %v591
    %v2864 = vmul.f32 %v2804, %v592
    %v2865 = vmul.f32 %v2808, %v593
    %v2866 = vmul.f32 %v2812, %v594
    %v2867 = vmul.f32 %v2816, %v595
    %v2868 = vmul.f32 %v2820, %v596
    %v2869 = vmul.f32 %v2824, %v597
    %v2870 = vmul.f32 %v2828, %v598
    %v2871 = vmul.f32 %v2832, %v599
    %v2872 = vmul.f32 %v2836, %v600
    %v2873 = vmul.f32 %v2840, %v601
    %2906 = vrot.lane.b32.xlu0 %v2842, 96
    %v2907 = vpop.permute.xlu0 %2906
    %2908 = vrot.lane.b32.xlu0 %v2843, 96
    %v2909 = vpop.permute.xlu0 %2908
    %2910 = vrot.lane.b32.xlu0 %v2844, 96
    %v2911 = vpop.permute.xlu0 %2910
    %2912 = vrot.lane.b32.xlu0 %v2845, 96
    %v2913 = vpop.permute.xlu0 %2912
    %2914 = vrot.lane.b32.xlu0 %v2846, 96
    %v2915 = vpop.permute.xlu0 %2914
    %2916 = vrot.lane.b32.xlu0 %v2847, 96
    %v2917 = vpop.permute.xlu0 %2916
    %2918 = vrot.lane.b32.xlu0 %v2848, 96
    %v2919 = vpop.permute.xlu0 %2918
    %2920 = vrot.lane.b32.xlu0 %v2849, 96
    %v2921 = vpop.permute.xlu0 %2920
    %2922 = vrot.lane.b32.xlu0 %v2850, 96
    %v2923 = vpop.permute.xlu0 %2922
    %2924 = vrot.lane.b32.xlu0 %v2851, 96
    %v2925 = vpop.permute.xlu0 %2924
    %2926 = vrot.lane.b32.xlu0 %v2852, 96
    %v2927 = vpop.permute.xlu0 %2926
    %2928 = vrot.lane.b32.xlu0 %v2853, 96
    %v2929 = vpop.permute.xlu0 %2928
    %2930 = vrot.lane.b32.xlu0 %v2854, 96
    %v2931 = vpop.permute.xlu0 %2930
    %2932 = vrot.lane.b32.xlu0 %v2855, 96
    %v2933 = vpop.permute.xlu0 %2932
    %2934 = vrot.lane.b32.xlu0 %v2856, 96
    %v2935 = vpop.permute.xlu0 %2934
    %2936 = vrot.lane.b32.xlu0 %v2857, 96
    %v2937 = vpop.permute.xlu0 %2936
    %2938 = vrot.lane.b32.xlu0 %v2858, 96
    %v2939 = vpop.permute.xlu0 %2938
    %2940 = vrot.lane.b32.xlu0 %v2859, 96
    %v2941 = vpop.permute.xlu0 %2940
    %2942 = vrot.lane.b32.xlu0 %v2860, 96
    %v2943 = vpop.permute.xlu0 %2942
    %2944 = vrot.lane.b32.xlu0 %v2861, 96
    %v2945 = vpop.permute.xlu0 %2944
    %2946 = vrot.lane.b32.xlu0 %v2862, 96
    %v2947 = vpop.permute.xlu0 %2946
    %2948 = vrot.lane.b32.xlu0 %v2863, 96
    %v2949 = vpop.permute.xlu0 %2948
    %2950 = vrot.lane.b32.xlu0 %v2864, 96
    %v2951 = vpop.permute.xlu0 %2950
    %2952 = vrot.lane.b32.xlu0 %v2865, 96
    %v2953 = vpop.permute.xlu0 %2952
    %2954 = vrot.lane.b32.xlu0 %v2866, 96
    %v2955 = vpop.permute.xlu0 %2954
    %2956 = vrot.lane.b32.xlu0 %v2867, 96
    %v2957 = vpop.permute.xlu0 %2956
    %2958 = vrot.lane.b32.xlu0 %v2868, 96
    %v2959 = vpop.permute.xlu0 %2958
    %2960 = vrot.lane.b32.xlu0 %v2869, 96
    %v2961 = vpop.permute.xlu0 %2960
    %2962 = vrot.lane.b32.xlu0 %v2870, 96
    %v2963 = vpop.permute.xlu0 %2962
    %2964 = vrot.lane.b32.xlu0 %v2871, 96
    %v2965 = vpop.permute.xlu0 %2964
    %2966 = vrot.lane.b32.xlu0 %v2872, 96
    %v2967 = vpop.permute.xlu0 %2966
    %2968 = vrot.lane.b32.xlu0 %v2873, 96
    %v2969 = vpop.permute.xlu0 %2968
    %v3002 = vadd.f32 %v2682, %v2907
    %v3003 = vadd.f32 %v2683, %v2909
    %v3004 = vadd.f32 %v2684, %v2911
    %v3005 = vadd.f32 %v2685, %v2913
    %v3006 = vadd.f32 %v2686, %v2915
    %v3007 = vadd.f32 %v2687, %v2917
    %v3008 = vadd.f32 %v2688, %v2919
    %v3009 = vadd.f32 %v2689, %v2921
    %v3010 = vadd.f32 %v2690, %v2923
    %v3011 = vadd.f32 %v2691, %v2925
    %v3012 = vadd.f32 %v2692, %v2927
    %v3013 = vadd.f32 %v2693, %v2929
    %v3014 = vadd.f32 %v2694, %v2931
    %v3015 = vadd.f32 %v2695, %v2933
    %v3016 = vadd.f32 %v2696, %v2935
    %v3017 = vadd.f32 %v2697, %v2937
    %v3018 = vadd.f32 %v2698, %v2939
    %v3019 = vadd.f32 %v2699, %v2941
    %v3020 = vadd.f32 %v2700, %v2943
    %v3021 = vadd.f32 %v2701, %v2945
    %v3022 = vadd.f32 %v2702, %v2947
    %v3023 = vadd.f32 %v2703, %v2949
    %v3024 = vadd.f32 %v2704, %v2951
    %v3025 = vadd.f32 %v2705, %v2953
    %v3026 = vadd.f32 %v2706, %v2955
    %v3027 = vadd.f32 %v2707, %v2957
    %v3028 = vadd.f32 %v2708, %v2959
    %v3029 = vadd.f32 %v2709, %v2961
    %v3030 = vadd.f32 %v2710, %v2963
    %v3031 = vadd.f32 %v2711, %v2965
    %v3032 = vadd.f32 %v2712, %v2967
    %v3033 = vadd.f32 %v2713, %v2969
    %3066 = vrot.lane.b32.xlu0 %v1786, 32
    %v3067 = vpop.permute.xlu0 %3066
    %3068 = vrot.lane.b32.xlu0 %v1787, 32
    %v3069 = vpop.permute.xlu0 %3068
    %3070 = vrot.lane.b32.xlu0 %v1788, 32
    %v3071 = vpop.permute.xlu0 %3070
    %3072 = vrot.lane.b32.xlu0 %v1789, 32
    %v3073 = vpop.permute.xlu0 %3072
    %3074 = vrot.lane.b32.xlu0 %v1790, 32
    %v3075 = vpop.permute.xlu0 %3074
    %3076 = vrot.lane.b32.xlu0 %v1791, 32
    %v3077 = vpop.permute.xlu0 %3076
    %3078 = vrot.lane.b32.xlu0 %v1792, 32
    %v3079 = vpop.permute.xlu0 %3078
    %3080 = vrot.lane.b32.xlu0 %v1793, 32
    %v3081 = vpop.permute.xlu0 %3080
    %3082 = vrot.lane.b32.xlu0 %v1794, 32
    %v3083 = vpop.permute.xlu0 %3082
    %3084 = vrot.lane.b32.xlu0 %v1795, 32
    %v3085 = vpop.permute.xlu0 %3084
    %3086 = vrot.lane.b32.xlu0 %v1796, 32
    %v3087 = vpop.permute.xlu0 %3086
    %3088 = vrot.lane.b32.xlu0 %v1797, 32
    %v3089 = vpop.permute.xlu0 %3088
    %3090 = vrot.lane.b32.xlu0 %v1798, 32
    %v3091 = vpop.permute.xlu0 %3090
    %3092 = vrot.lane.b32.xlu0 %v1799, 32
    %v3093 = vpop.permute.xlu0 %3092
    %3094 = vrot.lane.b32.xlu0 %v1800, 32
    %v3095 = vpop.permute.xlu0 %3094
    %3096 = vrot.lane.b32.xlu0 %v1801, 32
    %v3097 = vpop.permute.xlu0 %3096
    %3098 = vrot.lane.b32.xlu0 %v1802, 32
    %v3099 = vpop.permute.xlu0 %3098
    %3100 = vrot.lane.b32.xlu0 %v1803, 32
    %v3101 = vpop.permute.xlu0 %3100
    %3102 = vrot.lane.b32.xlu0 %v1804, 32
    %v3103 = vpop.permute.xlu0 %3102
    %3104 = vrot.lane.b32.xlu0 %v1805, 32
    %v3105 = vpop.permute.xlu0 %3104
    %3106 = vrot.lane.b32.xlu0 %v1806, 32
    %v3107 = vpop.permute.xlu0 %3106
    %3108 = vrot.lane.b32.xlu0 %v1807, 32
    %v3109 = vpop.permute.xlu0 %3108
    %3110 = vrot.lane.b32.xlu0 %v1808, 32
    %v3111 = vpop.permute.xlu0 %3110
    %3112 = vrot.lane.b32.xlu0 %v1809, 32
    %v3113 = vpop.permute.xlu0 %3112
    %3114 = vrot.lane.b32.xlu0 %v1810, 32
    %v3115 = vpop.permute.xlu0 %3114
    %3116 = vrot.lane.b32.xlu0 %v1811, 32
    %v3117 = vpop.permute.xlu0 %3116
    %3118 = vrot.lane.b32.xlu0 %v1812, 32
    %v3119 = vpop.permute.xlu0 %3118
    %3120 = vrot.lane.b32.xlu0 %v1813, 32
    %v3121 = vpop.permute.xlu0 %3120
    %3122 = vrot.lane.b32.xlu0 %v1814, 32
    %v3123 = vpop.permute.xlu0 %3122
    %3124 = vrot.lane.b32.xlu0 %v1815, 32
    %v3125 = vpop.permute.xlu0 %3124
    %3126 = vrot.lane.b32.xlu0 %v1816, 32
    %v3127 = vpop.permute.xlu0 %3126
    %3128 = vrot.lane.b32.xlu0 %v1817, 32
    %v3129 = vpop.permute.xlu0 %3128
    %3194 = vrot.lane.b32.xlu0 %v2394, 64
    %v3195 = vpop.permute.xlu0 %3194
    %3196 = vrot.lane.b32.xlu0 %v2395, 64
    %v3197 = vpop.permute.xlu0 %3196
    %3198 = vrot.lane.b32.xlu0 %v2396, 64
    %v3199 = vpop.permute.xlu0 %3198
    %3200 = vrot.lane.b32.xlu0 %v2397, 64
    %v3201 = vpop.permute.xlu0 %3200
    %3202 = vrot.lane.b32.xlu0 %v2398, 64
    %v3203 = vpop.permute.xlu0 %3202
    %3204 = vrot.lane.b32.xlu0 %v2399, 64
    %v3205 = vpop.permute.xlu0 %3204
    %3206 = vrot.lane.b32.xlu0 %v2400, 64
    %v3207 = vpop.permute.xlu0 %3206
    %3208 = vrot.lane.b32.xlu0 %v2401, 64
    %v3209 = vpop.permute.xlu0 %3208
    %3210 = vrot.lane.b32.xlu0 %v2402, 64
    %v3211 = vpop.permute.xlu0 %3210
    %3212 = vrot.lane.b32.xlu0 %v2403, 64
    %v3213 = vpop.permute.xlu0 %3212
    %3214 = vrot.lane.b32.xlu0 %v2404, 64
    %v3215 = vpop.permute.xlu0 %3214
    %3216 = vrot.lane.b32.xlu0 %v2405, 64
    %v3217 = vpop.permute.xlu0 %3216
    %3218 = vrot.lane.b32.xlu0 %v2406, 64
    %v3219 = vpop.permute.xlu0 %3218
    %3220 = vrot.lane.b32.xlu0 %v2407, 64
    %v3221 = vpop.permute.xlu0 %3220
    %3222 = vrot.lane.b32.xlu0 %v2408, 64
    %v3223 = vpop.permute.xlu0 %3222
    %3224 = vrot.lane.b32.xlu0 %v2409, 64
    %v3225 = vpop.permute.xlu0 %3224
    %3226 = vrot.lane.b32.xlu0 %v2410, 64
    %v3227 = vpop.permute.xlu0 %3226
    %3228 = vrot.lane.b32.xlu0 %v2411, 64
    %v3229 = vpop.permute.xlu0 %3228
    %3230 = vrot.lane.b32.xlu0 %v2412, 64
    %v3231 = vpop.permute.xlu0 %3230
    %3232 = vrot.lane.b32.xlu0 %v2413, 64
    %v3233 = vpop.permute.xlu0 %3232
    %3234 = vrot.lane.b32.xlu0 %v2414, 64
    %v3235 = vpop.permute.xlu0 %3234
    %3236 = vrot.lane.b32.xlu0 %v2415, 64
    %v3237 = vpop.permute.xlu0 %3236
    %3238 = vrot.lane.b32.xlu0 %v2416, 64
    %v3239 = vpop.permute.xlu0 %3238
    %3240 = vrot.lane.b32.xlu0 %v2417, 64
    %v3241 = vpop.permute.xlu0 %3240
    %3242 = vrot.lane.b32.xlu0 %v2418, 64
    %v3243 = vpop.permute.xlu0 %3242
    %3244 = vrot.lane.b32.xlu0 %v2419, 64
    %v3245 = vpop.permute.xlu0 %3244
    %3246 = vrot.lane.b32.xlu0 %v2420, 64
    %v3247 = vpop.permute.xlu0 %3246
    %3248 = vrot.lane.b32.xlu0 %v2421, 64
    %v3249 = vpop.permute.xlu0 %3248
    %3250 = vrot.lane.b32.xlu0 %v2422, 64
    %v3251 = vpop.permute.xlu0 %3250
    %3252 = vrot.lane.b32.xlu0 %v2423, 64
    %v3253 = vpop.permute.xlu0 %3252
    %3254 = vrot.lane.b32.xlu0 %v2424, 64
    %v3255 = vpop.permute.xlu0 %3254
    %3256 = vrot.lane.b32.xlu0 %v2425, 64
    %v3257 = vpop.permute.xlu0 %3256
    %3322 = vrot.lane.b32.xlu0 %v3002, 96
    %v3323 = vpop.permute.xlu0 %3322
    %3324 = vrot.lane.b32.xlu0 %v3003, 96
    %v3325 = vpop.permute.xlu0 %3324
    %3326 = vrot.lane.b32.xlu0 %v3004, 96
    %v3327 = vpop.permute.xlu0 %3326
    %3328 = vrot.lane.b32.xlu0 %v3005, 96
    %v3329 = vpop.permute.xlu0 %3328
    %3330 = vrot.lane.b32.xlu0 %v3006, 96
    %v3331 = vpop.permute.xlu0 %3330
    %3332 = vrot.lane.b32.xlu0 %v3007, 96
    %v3333 = vpop.permute.xlu0 %3332
    %3334 = vrot.lane.b32.xlu0 %v3008, 96
    %v3335 = vpop.permute.xlu0 %3334
    %3336 = vrot.lane.b32.xlu0 %v3009, 96
    %v3337 = vpop.permute.xlu0 %3336
    %3338 = vrot.lane.b32.xlu0 %v3010, 96
    %v3339 = vpop.permute.xlu0 %3338
    %3340 = vrot.lane.b32.xlu0 %v3011, 96
    %v3341 = vpop.permute.xlu0 %3340
    %3342 = vrot.lane.b32.xlu0 %v3012, 96
    %v3343 = vpop.permute.xlu0 %3342
    %3344 = vrot.lane.b32.xlu0 %v3013, 96
    %v3345 = vpop.permute.xlu0 %3344
    %3346 = vrot.lane.b32.xlu0 %v3014, 96
    %v3347 = vpop.permute.xlu0 %3346
    %3348 = vrot.lane.b32.xlu0 %v3015, 96
    %v3349 = vpop.permute.xlu0 %3348
    %3350 = vrot.lane.b32.xlu0 %v3016, 96
    %v3351 = vpop.permute.xlu0 %3350
    %3352 = vrot.lane.b32.xlu0 %v3017, 96
    %v3353 = vpop.permute.xlu0 %3352
    %3354 = vrot.lane.b32.xlu0 %v3018, 96
    %v3355 = vpop.permute.xlu0 %3354
    %3356 = vrot.lane.b32.xlu0 %v3019, 96
    %v3357 = vpop.permute.xlu0 %3356
    %3358 = vrot.lane.b32.xlu0 %v3020, 96
    %v3359 = vpop.permute.xlu0 %3358
    %3360 = vrot.lane.b32.xlu0 %v3021, 96
    %v3361 = vpop.permute.xlu0 %3360
    %3362 = vrot.lane.b32.xlu0 %v3022, 96
    %v3363 = vpop.permute.xlu0 %3362
    %3364 = vrot.lane.b32.xlu0 %v3023, 96
    %v3365 = vpop.permute.xlu0 %3364
    %3366 = vrot.lane.b32.xlu0 %v3024, 96
    %v3367 = vpop.permute.xlu0 %3366
    %3368 = vrot.lane.b32.xlu0 %v3025, 96
    %v3369 = vpop.permute.xlu0 %3368
    %3370 = vrot.lane.b32.xlu0 %v3026, 96
    %v3371 = vpop.permute.xlu0 %3370
    %3372 = vrot.lane.b32.xlu0 %v3027, 96
    %v3373 = vpop.permute.xlu0 %3372
    %3374 = vrot.lane.b32.xlu0 %v3028, 96
    %v3375 = vpop.permute.xlu0 %3374
    %3376 = vrot.lane.b32.xlu0 %v3029, 96
    %v3377 = vpop.permute.xlu0 %3376
    %3378 = vrot.lane.b32.xlu0 %v3030, 96
    %v3379 = vpop.permute.xlu0 %3378
    %3380 = vrot.lane.b32.xlu0 %v3031, 96
    %v3381 = vpop.permute.xlu0 %3380
    %3382 = vrot.lane.b32.xlu0 %v3032, 96
    %v3383 = vpop.permute.xlu0 %3382
    %3384 = vrot.lane.b32.xlu0 %v3033, 96
    %v3385 = vpop.permute.xlu0 %3384
    %vm3418 = vcmask 261120
    %v3419 = vsel %vm3418, %v1178, %v3067
    %v3420 = vsel %vm3418, %v1179, %v3069
    %v3421 = vsel %vm3418, %v1180, %v3071
    %v3422 = vsel %vm3418, %v1181, %v3073
    %v3423 = vsel %vm3418, %v1182, %v3075
    %v3424 = vsel %vm3418, %v1183, %v3077
    %v3425 = vsel %vm3418, %v1184, %v3079
    %v3426 = vsel %vm3418, %v1185, %v3081
    %v3427 = vsel %vm3418, %v1186, %v3083
    %v3428 = vsel %vm3418, %v1187, %v3085
    %v3429 = vsel %vm3418, %v1188, %v3087
    %v3430 = vsel %vm3418, %v1189, %v3089
    %v3431 = vsel %vm3418, %v1190, %v3091
    %v3432 = vsel %vm3418, %v1191, %v3093
    %v3433 = vsel %vm3418, %v1192, %v3095
    %v3434 = vsel %vm3418, %v1193, %v3097
    %v3435 = vsel %vm3418, %v1194, %v3099
    %v3436 = vsel %vm3418, %v1195, %v3101
    %v3437 = vsel %vm3418, %v1196, %v3103
    %v3438 = vsel %vm3418, %v1197, %v3105
    %v3439 = vsel %vm3418, %v1198, %v3107
    %v3440 = vsel %vm3418, %v1199, %v3109
    %v3441 = vsel %vm3418, %v1200, %v3111
    %v3442 = vsel %vm3418, %v1201, %v3113
    %v3443 = vsel %vm3418, %v1202, %v3115
    %v3444 = vsel %vm3418, %v1203, %v3117
    %v3445 = vsel %vm3418, %v1204, %v3119
    %v3446 = vsel %vm3418, %v1205, %v3121
    %v3447 = vsel %vm3418, %v1206, %v3123
    %v3448 = vsel %vm3418, %v1207, %v3125
    %v3449 = vsel %vm3418, %v1208, %v3127
    %v3450 = vsel %vm3418, %v1209, %v3129
    %vm3451 = vcmask 523264
    %v3452 = vsel %vm3451, %v3419, %v3195
    %v3453 = vsel %vm3451, %v3420, %v3197
    %v3454 = vsel %vm3451, %v3421, %v3199
    %v3455 = vsel %vm3451, %v3422, %v3201
    %v3456 = vsel %vm3451, %v3423, %v3203
    %v3457 = vsel %vm3451, %v3424, %v3205
    %v3458 = vsel %vm3451, %v3425, %v3207
    %v3459 = vsel %vm3451, %v3426, %v3209
    %v3460 = vsel %vm3451, %v3427, %v3211
    %v3461 = vsel %vm3451, %v3428, %v3213
    %v3462 = vsel %vm3451, %v3429, %v3215
    %v3463 = vsel %vm3451, %v3430, %v3217
    %v3464 = vsel %vm3451, %v3431, %v3219
    %v3465 = vsel %vm3451, %v3432, %v3221
    %v3466 = vsel %vm3451, %v3433, %v3223
    %v3467 = vsel %vm3451, %v3434, %v3225
    %v3468 = vsel %vm3451, %v3435, %v3227
    %v3469 = vsel %vm3451, %v3436, %v3229
    %v3470 = vsel %vm3451, %v3437, %v3231
    %v3471 = vsel %vm3451, %v3438, %v3233
    %v3472 = vsel %vm3451, %v3439, %v3235
    %v3473 = vsel %vm3451, %v3440, %v3237
    %v3474 = vsel %vm3451, %v3441, %v3239
    %v3475 = vsel %vm3451, %v3442, %v3241
    %v3476 = vsel %vm3451, %v3443, %v3243
    %v3477 = vsel %vm3451, %v3444, %v3245
    %v3478 = vsel %vm3451, %v3445, %v3247
    %v3479 = vsel %vm3451, %v3446, %v3249
    %v3480 = vsel %vm3451, %v3447, %v3251
    %v3481 = vsel %vm3451, %v3448, %v3253
    %v3482 = vsel %vm3451, %v3449, %v3255
    %v3483 = vsel %vm3451, %v3450, %v3257
    %vm3484 = vcmask 785408
    %v3485 = vsel %vm3484, %v3452, %v3323
    %v3486 = vsel %vm3484, %v3453, %v3325
    %v3487 = vsel %vm3484, %v3454, %v3327
    %v3488 = vsel %vm3484, %v3455, %v3329
    %v3489 = vsel %vm3484, %v3456, %v3331
    %v3490 = vsel %vm3484, %v3457, %v3333
    %v3491 = vsel %vm3484, %v3458, %v3335
    %v3492 = vsel %vm3484, %v3459, %v3337
    %v3493 = vsel %vm3484, %v3460, %v3339
    %v3494 = vsel %vm3484, %v3461, %v3341
    %v3495 = vsel %vm3484, %v3462, %v3343
    %v3496 = vsel %vm3484, %v3463, %v3345
    %v3497 = vsel %vm3484, %v3464, %v3347
    %v3498 = vsel %vm3484, %v3465, %v3349
    %v3499 = vsel %vm3484, %v3466, %v3351
    %v3500 = vsel %vm3484, %v3467, %v3353
    %v3501 = vsel %vm3484, %v3468, %v3355
    %v3502 = vsel %vm3484, %v3469, %v3357
    %v3503 = vsel %vm3484, %v3470, %v3359
    %v3504 = vsel %vm3484, %v3471, %v3361
    %v3505 = vsel %vm3484, %v3472, %v3363
    %v3506 = vsel %vm3484, %v3473, %v3365
    %v3507 = vsel %vm3484, %v3474, %v3367
    %v3508 = vsel %vm3484, %v3475, %v3369
    %v3509 = vsel %vm3484, %v3476, %v3371
    %v3510 = vsel %vm3484, %v3477, %v3373
    %v3511 = vsel %vm3484, %v3478, %v3375
    %v3512 = vsel %vm3484, %v3479, %v3377
    %v3513 = vsel %vm3484, %v3480, %v3379
    %v3514 = vsel %vm3484, %v3481, %v3381
    %v3515 = vsel %vm3484, %v3482, %v3383
    %v3516 = vsel %vm3484, %v3483, %v3385
    %v3517 = vadd.f32 %v18, %v378
    %v3518 = vadd.f32 %v19, %v379
    %v3519 = vadd.f32 %v20, %v380
    %v3520 = vadd.f32 %v21, %v381
    %v3521 = vadd.f32 %v22, %v382
    %v3522 = vadd.f32 %v23, %v383
    %v3523 = vadd.f32 %v24, %v384
    %v3524 = vadd.f32 %v25, %v385
    %v3525 = vadd.f32 %v26, %v386
    %v3526 = vadd.f32 %v27, %v387
    %v3527 = vadd.f32 %v28, %v388
    %v3528 = vadd.f32 %v29, %v389
    %v3529 = vadd.f32 %v30, %v390
    %v3530 = vadd.f32 %v31, %v391
    %v3531 = vadd.f32 %v32, %v392
    %v3532 = vadd.f32 %v33, %v393
    %v3533 = vadd.f32 %v34, %v394
    %v3534 = vadd.f32 %v35, %v395
    %v3535 = vadd.f32 %v36, %v396
    %v3536 = vadd.f32 %v37, %v397
    %v3537 = vadd.f32 %v38, %v398
    %v3538 = vadd.f32 %v39, %v399
    %v3539 = vadd.f32 %v40, %v400
    %v3540 = vadd.f32 %v41, %v401
    %v3541 = vadd.f32 %v42, %v402
    %v3542 = vadd.f32 %v43, %v403
    %v3543 = vadd.f32 %v44, %v404
    %v3544 = vadd.f32 %v45, %v405
    %v3545 = vadd.f32 %v46, %v406
    %v3546 = vadd.f32 %v47, %v407
    %v3547 = vadd.f32 %v48, %v408
    %v3548 = vadd.f32 %v49, %v409
    %v3549 = vadd.f32 %v3517, %v3485
    %v3550 = vadd.f32 %v3518, %v3486
    %v3551 = vadd.f32 %v3519, %v3487
    %v3552 = vadd.f32 %v3520, %v3488
    %v3553 = vadd.f32 %v3521, %v3489
    %v3554 = vadd.f32 %v3522, %v3490
    %v3555 = vadd.f32 %v3523, %v3491
    %v3556 = vadd.f32 %v3524, %v3492
    %v3557 = vadd.f32 %v3525, %v3493
    %v3558 = vadd.f32 %v3526, %v3494
    %v3559 = vadd.f32 %v3527, %v3495
    %v3560 = vadd.f32 %v3528, %v3496
    %v3561 = vadd.f32 %v3529, %v3497
    %v3562 = vadd.f32 %v3530, %v3498
    %v3563 = vadd.f32 %v3531, %v3499
    %v3564 = vadd.f32 %v3532, %v3500
    %v3565 = vadd.f32 %v3533, %v3501
    %v3566 = vadd.f32 %v3534, %v3502
    %v3567 = vadd.f32 %v3535, %v3503
    %v3568 = vadd.f32 %v3536, %v3504
    %v3569 = vadd.f32 %v3537, %v3505
    %v3570 = vadd.f32 %v3538, %v3506
    %v3571 = vadd.f32 %v3539, %v3507
    %v3572 = vadd.f32 %v3540, %v3508
    %v3573 = vadd.f32 %v3541, %v3509
    %v3574 = vadd.f32 %v3542, %v3510
    %v3575 = vadd.f32 %v3543, %v3511
    %v3576 = vadd.f32 %v3544, %v3512
    %v3577 = vadd.f32 %v3545, %v3513
    %v3578 = vadd.f32 %v3546, %v3514
    %v3579 = vadd.f32 %v3547, %v3515
    %v3580 = vadd.f32 %v3548, %v3516
    %3581 = vst [vmem:[#allocation2] sm:$0xff] %v3549
    %3582 = vst [vmem:[#allocation2 + $0x8] sm:$0xff] %v3550
    %3583 = vst [vmem:[#allocation2 + $0x10] sm:$0xff] %v3551
    %3584 = vst [vmem:[#allocation2 + $0x18] sm:$0xff] %v3552
    %3585 = vst [vmem:[#allocation2 + $0x20] sm:$0xff] %v3553
    %3586 = vst [vmem:[#allocation2 + $0x28] sm:$0xff] %v3554
    %3587 = vst [vmem:[#allocation2 + $0x30] sm:$0xff] %v3555
    %3588 = vst [vmem:[#allocation2 + $0x38] sm:$0xff] %v3556
    %3589 = vst [vmem:[#allocation2 + $0x40] sm:$0xff] %v3557
    %3590 = vst [vmem:[#allocation2 + $0x48] sm:$0xff] %v3558
    %3591 = vst [vmem:[#allocation2 + $0x50] sm:$0xff] %v3559
    %3592 = vst [vmem:[#allocation2 + $0x58] sm:$0xff] %v3560
    %3593 = vst [vmem:[#allocation2 + $0x60] sm:$0xff] %v3561
    %3594 = vst [vmem:[#allocation2 + $0x68] sm:$0xff] %v3562
    %3595 = vst [vmem:[#allocation2 + $0x70] sm:$0xff] %v3563
    %3596 = vst [vmem:[#allocation2 + $0x78] sm:$0xff] %v3564
    %3597 = vst [vmem:[#allocation2 + $0x80] sm:$0xff] %v3565
    %3598 = vst [vmem:[#allocation2 + $0x88] sm:$0xff] %v3566
    %3599 = vst [vmem:[#allocation2 + $0x90] sm:$0xff] %v3567
    %3600 = vst [vmem:[#allocation2 + $0x98] sm:$0xff] %v3568
    %3601 = vst [vmem:[#allocation2 + $0xa0] sm:$0xff] %v3569
    %3602 = vst [vmem:[#allocation2 + $0xa8] sm:$0xff] %v3570
    %3603 = vst [vmem:[#allocation2 + $0xb0] sm:$0xff] %v3571
    %3604 = vst [vmem:[#allocation2 + $0xb8] sm:$0xff] %v3572
    %3605 = vst [vmem:[#allocation2 + $0xc0] sm:$0xff] %v3573
    %3606 = vst [vmem:[#allocation2 + $0xc8] sm:$0xff] %v3574
    %3607 = vst [vmem:[#allocation2 + $0xd0] sm:$0xff] %v3575
    %3608 = vst [vmem:[#allocation2 + $0xd8] sm:$0xff] %v3576
    %3609 = vst [vmem:[#allocation2 + $0xe0] sm:$0xff] %v3577
    %3610 = vst [vmem:[#allocation2 + $0xe8] sm:$0xff] %v3578
    %3611 = vst [vmem:[#allocation2 + $0xf0] sm:$0xff] %v3579
    %3612 = vst [vmem:[#allocation2 + $0xf8] sm:$0xff] %v3580
    // Predicated region
    $region18: #{tpu_custom_call.1} parent=1 // pred_check
      _
    $region19: #{tpu_custom_call.1} parent=1 // pred_check_branch
      %3614 = sbr.rel (0) target = $region21
    $region20: #{tpu_custom_call.1} parent=1 // pred_region
      %s3616 = ssub.s32 4096, 4096
      %3617 = vsyncadd [#allocation3], %s3616
      %s3618 = sshll.u32 [#allocation2], 4
      %s3619 = int_to_ptr.vmem [resolvable:$true] %s3618
      %3624 = dma.vmem_to_hbm [thread:$0]  %s3619, 4096, %s4, [#allocation3], 128, 128, 8
    $region21: #{tpu_custom_call.1} parent=1 // pred_fallthru
      _
    // Predicated region
    $region22: #{tpu_custom_call.1} parent=1 // pred_check
      _
    $region23: #{tpu_custom_call.1} parent=1 // pred_check_branch
      %3626 = sbr.rel (0) target = $region25
    $region24: #{tpu_custom_call.1} parent=1 // pred_region
      %3627 = dma.done [#allocation3], 4096
    $region25: #{tpu_custom_call.1} parent=1 // pred_fallthru
      _
    %3628 = vsyncpa [#allocation3], 1

</llo_original>
